<compile_context>
chip_gen: v5e
topology: v5e:2x2
jax: 0.10.0
libtpu: 0.0.40
codegen_flags: <defaults>
</compile_context>

<pallas_src>
import math

import jax
import jax.numpy as jnp
from jax.experimental import pallas as pl
from jax.experimental.pallas import tpu as pltpu


def _rup(v, m):
    return ((v + m - 1) // m) * m


def _fold_mlp(layers):
    """Fold eval-BN of layers 1 and 2 into the next layer's weights/bias.

    layers: 3 tuples (w, b, scale, shift); returns
      (w1, b1), (w2', b2'), (w3', b3'), (s3, t3)
    so that the kernel computes relu(.)@w2'+b2' etc. with only the last BN
    applied explicitly.
    """
    (w1, b1, s1, t1), (w2, b2, s2, t2), (w3, b3, s3, t3) = layers
    w2f = s1[:, None] * w2
    b2f = b2 + t1 @ w2
    w3f = s2[:, None] * w3
    b3f = b3 + t2 @ w3
    return (w1, b1), (w2f, b2f), (w3f, b3f), (s3, t3)


# ----------------------------------------------------------------------------
# Fused SA "PointConv" kernel: rel + radius mask + 3-layer MLP + masked max
# ----------------------------------------------------------------------------

def _make_sa_kernel(n_valid, r2, has_x):
    def kernel(*refs):
        if has_x:
            (c_ref, p_ref, x_ref, w1x, w1r, b1,
             w2, b2, w3, b3, s3, t3, o_ref) = refs
        else:
            (c_ref, p_ref, w1r, b1,
             w2, b2, w3, b3, s3, t3, o_ref) = refs

        tm = c_ref.shape[0]
        np_ = p_ref.shape[0]

        c = c_ref[...]                                 # (tm, 3)  f32 centers
        p = p_ref[...]                                 # (np, 3)  f32 points
        rel = p[None, :, :] - c[:, None, :]            # (tm, np, 3)
        d2 = jnp.sum(rel * rel, axis=-1)               # (tm, np)
        j = jax.lax.broadcasted_iota(jnp.int32, (tm, np_), 1)
        # additive mask bias: 0 for valid in-radius candidates, -1e30 otherwise
        bias = jnp.where((d2 <= r2) & (j < n_valid), 0.0, -1.0e30)

        h1 = w1r.shape[1]
        # layer 1: per-edge rel contribution (K=3, kept f32 for precision)
        pre = jnp.dot(rel.reshape(tm * np_, 3), w1r[...],
                      preferred_element_type=jnp.float32)
        pre = pre.reshape(tm, np_, h1)
        if has_x:
            # per-source-point contribution, computed once per tile (not per edge)
            px = jnp.dot(x_ref[...], w1x[...],
                         preferred_element_type=jnp.float32)   # (np, h1)
            pre = pre + px[None, :, :]
        h = jnp.maximum(pre + b1[...], 0.0).reshape(tm * np_, h1)

        # layers 2, 3 (BN of layers 1,2 folded into weights by the wrapper)
        h = jnp.maximum(
            jnp.dot(h.astype(jnp.bfloat16), w2[...],
                    preferred_element_type=jnp.float32) + b2[...], 0.0)
        h = jnp.maximum(
            jnp.dot(h.astype(jnp.bfloat16), w3[...],
                    preferred_element_type=jnp.float32) + b3[...], 0.0)
        h = h * s3[...] + t3[...]                      # last-layer BN epilogue

        cout = h.shape[-1]
        h = h.reshape(tm, np_, cout)
        o_ref[...] = jnp.max(h + bias[:, :, None], axis=1)
    return kernel


def sa_conv(x_g, pos_g, center_pos, r, layers, target_rows=2048):
    """Fused PointConv aggregation for one SA stage.

    x_g:        [B, n, C_x] per-point features or None
    pos_g:      [B, n, 3]   per-point positions
    center_pos: [B, m, 3]   sampled centers (subset of pos_g)
    returns     [B, m, Cout] masked max over in-radius neighbors of the MLP.
    """
    B, n, _ = pos_g.shape
    m = center_pos.shape[1]
    has_x = x_g is not None

    (w1, b1), (w2, b2), (w3, b3), (s3, t3) = _fold_mlp(layers)
    cx = w1.shape[0] - 3
    w1x, w1r = w1[:cx], w1[cx:]
    h1, h2, h3 = w1.shape[1], w2.shape[1], w3.shape[1]

    # neighbor axis padded to 16 (bf16 sublane packing); centers tiled so that
    # tile_m * n_p ~ target_rows MLP rows per grid step.
    n_p = _rup(n, 16)
    tile_m = max(8, min(_rup(m, 8), (target_rows // n_p) // 8 * 8))
    if B == 1:
        # keep >= 2 grid tiles when possible so both v7x TensorCores get work
        tile_m = min(tile_m, max(8, (_rup(m, 8) // 2) // 8 * 8))
    m_p = _rup(m, tile_m)

    pos_p = jnp.pad(pos_g, ((0, 0), (0, n_p - n), (0, 0)))
    cen_p = jnp.pad(center_pos, ((0, 0), (0, m_p - m), (0, 0)))

    args = [cen_p, pos_p]
    in_specs = [
        pl.BlockSpec((None, tile_m, 3), lambda b, t: (b, t, 0)),
        pl.BlockSpec((None, n_p, 3), lambda b, t: (b, 0, 0)),
    ]
    if has_x:
        x_p = jnp.pad(x_g, ((0, 0), (0, n_p - n), (0, 0))).astype(jnp.bfloat16)
        args += [x_p, w1x.astype(jnp.bfloat16)]
        in_specs += [
            pl.BlockSpec((None, n_p, cx), lambda b, t: (b, 0, 0)),
            pl.BlockSpec((cx, h1), lambda b, t: (0, 0)),
        ]

    def full2(shape):
        return pl.BlockSpec(shape, lambda b, t: (0, 0))

    args += [w1r, b1.reshape(1, h1),
             w2.astype(jnp.bfloat16), b2.reshape(1, h2),
             w3.astype(jnp.bfloat16), b3.reshape(1, h3),
             s3.reshape(1, h3), t3.reshape(1, h3)]
    in_specs += [full2((3, h1)), full2((1, h1)),
                 full2((h1, h2)), full2((1, h2)),
                 full2((h2, h3)), full2((1, h3)),
                 full2((1, h3)), full2((1, h3))]

    out = pl.pallas_call(
        _make_sa_kernel(n, r * r, has_x),
        out_shape=jax.ShapeDtypeStruct((B, m_p, h3), jnp.float32),
        grid=(B, m_p // tile_m),
        in_specs=in_specs,
        out_specs=pl.BlockSpec((None, tile_m, h3), lambda b, t: (b, t, 0)),
        compiler_params=pltpu.CompilerParams(
            dimension_semantics=("parallel", "parallel"),
            vmem_limit_bytes=48 * 1024 * 1024),
    )(*args)
    return out[:, :m]


# ----------------------------------------------------------------------------
# Fused GlobalSA (MLP + per-graph max pool) + classifier head kernel
# ----------------------------------------------------------------------------

def _make_global_head_kernel(n_valid):
    def kernel(x_ref, p_ref, w1x, w1p, b1, w2, b2, w3, b3, s3, t3,
               hw1, hb1, hw2, hb2, hw3, hb3, o_ref):
        bt, np_, cx = x_ref.shape
        x = x_ref[...].reshape(bt * np_, cx)           # bf16
        p = p_ref[...].reshape(bt * np_, 3)            # f32

        pre = jnp.dot(x, w1x[...], preferred_element_type=jnp.float32)
        pre = pre + jnp.dot(p, w1p[...], preferred_element_type=jnp.float32)
        h = jnp.maximum(pre + b1[...], 0.0)
        h = jnp.maximum(
            jnp.dot(h.astype(jnp.bfloat16), w2[...],
                    preferred_element_type=jnp.float32) + b2[...], 0.0)
        h = jnp.maximum(
            jnp.dot(h.astype(jnp.bfloat16), w3[...],
                    preferred_element_type=jnp.float32) + b3[...], 0.0)
        h = h * s3[...] + t3[...]

        cout = h.shape[-1]
        h = h.reshape(bt, np_, cout)
        j = jax.lax.broadcasted_iota(jnp.int32, (bt, np_), 1)
        bias = jnp.where(j < n_valid, 0.0, -1.0e30)
        g = jnp.max(h + bias[:, :, None], axis=1)      # (bt, 1024) per-graph pool

        # classifier head.
        # TODO(synk): dropout(p=0.5) is identity here (eval mode, training=False).
        h = jnp.maximum(
            jnp.dot(g.astype(jnp.bfloat16), hw1[...],
                    preferred_element_type=jnp.float32) + hb1[...], 0.0)
        h = jnp.maximum(
            jnp.dot(h.astype(jnp.bfloat16), hw2[...],
                    preferred_element_type=jnp.float32) + hb2[...], 0.0)
        o_ref[...] = jnp.dot(h.astype(jnp.bfloat16), hw3[...],
                             preferred_element_type=jnp.float32) + hb3[...]
    return kernel


def global_sa_and_head(x, pos, B, sa3_layers, lin1, lin2, lin3_dict):
    """GlobalSAModule (MLP(cat([x,pos])) + global_max_pool) fused with the head."""
    M, cx = x.shape
    n = M // B                       # contiguous, equal-sized graphs
    x_g = x.reshape(B, n, cx)
    pos_g = pos.reshape(B, n, 3)

    (w1, b1), (w2, b2), (w3, b3), (s3, t3) = _fold_mlp(sa3_layers)
    w1x, w1p = w1[:cx], w1[cx:]
    h1, h2, h3 = w1.shape[1], w2.shape[1], w3.shape[1]

    keys = list(lin3_dict.keys())
    hw1, hb1 = lin1
    hw2, hb2 = lin2
    hw3 = jnp.concatenate([lin3_dict[k][0] for k in keys], axis=1)
    hb3 = jnp.concatenate([lin3_dict[k][1] for k in keys], axis=0)
    n_cls = hw3.shape[1] // len(keys)
    # pad head output columns to 128 for lane-dense (unmasked) stores
    ho = _rup(hw3.shape[1], 128)
    hw3 = jnp.pad(hw3, ((0, 0), (0, ho - hw3.shape[1])))
    hb3 = jnp.pad(hb3, ((0, ho - hb3.shape[0]),))
    hd1, hd2 = hw1.shape[1], hw2.shape[1]

    n_p = _rup(n, 16)
    bt = B if B <= 8 else 8
    Bp = _rup(B, bt)
    x_p = jnp.pad(x_g, ((0, Bp - B), (0, n_p - n), (0, 0))).astype(jnp.bfloat16)
    pos_p = jnp.pad(pos_g, ((0, Bp - B), (0, n_p - n), (0, 0)))

    def full(shape):
        return pl.BlockSpec(shape, lambda i, _s=len(shape): (0,) * _s)

    out = pl.pallas_call(
        _make_global_head_kernel(n),
        out_shape=jax.ShapeDtypeStruct((Bp, ho), jnp.float32),
        grid=(Bp // bt,),
        in_specs=[
            pl.BlockSpec((bt, n_p, cx), lambda i: (i, 0, 0)),
            pl.BlockSpec((bt, n_p, 3), lambda i: (i, 0, 0)),
            full((cx, h1)), full((3, h1)), full((1, h1)),
            full((h1, h2)), full((1, h2)),
            full((h2, h3)), full((1, h3)), full((1, h3)), full((1, h3)),
            full((h3, hd1)), full((1, hd1)),
            full((hd1, hd2)), full((1, hd2)),
            full((hd2, ho)), full((1, ho)),
        ],
        out_specs=pl.BlockSpec((bt, ho), lambda i: (i, 0)),
        compiler_params=pltpu.CompilerParams(
            dimension_semantics=("parallel",),
            vmem_limit_bytes=48 * 1024 * 1024),
    )(x_p, pos_p,
      w1x.astype(jnp.bfloat16), w1p, b1.reshape(1, h1),
      w2.astype(jnp.bfloat16), b2.reshape(1, h2),
      w3.astype(jnp.bfloat16), b3.reshape(1, h3),
      s3.reshape(1, h3), t3.reshape(1, h3),
      hw1.astype(jnp.bfloat16), hb1.reshape(1, hd1),
      hw2.astype(jnp.bfloat16), hb2.reshape(1, hd2),
      hw3.astype(jnp.bfloat16), hb3.reshape(1, ho))

    out = out[:B]
    return {k: out[:, i * n_cls:(i + 1) * n_cls] for i, k in enumerate(keys)}


# ----------------------------------------------------------------------------
# Graph construction glue (data-dependent; plain JAX)
# ----------------------------------------------------------------------------
# TODO(synk): torch_cluster.fps uses a random start point; here the start is
# deterministic (local index 0) so the whole script is reproducible.

def fps_one(pos_g, m):
    """Farthest point sampling on a single graph's points pos_g:[n,3] -> [m]."""
    def body(i, state):
        sel, dmin = state
        last = sel[i - 1]
        d = jnp.sum((pos_g - pos_g[last]) ** 2, axis=-1)
        dmin = jnp.minimum(dmin, d)
        sel = sel.at[i].set(jnp.argmax(dmin).astype(jnp.int32))
        return sel, dmin

    n = pos_g.shape[0]
    sel0 = jnp.zeros((m,), jnp.int32)
    dmin0 = jnp.full((n,), jnp.inf, jnp.float32)
    sel, _ = jax.lax.fori_loop(1, m, body, (sel0, dmin0))
    return sel


def sa_module(x, pos, B, n, ratio, r, layer_params):
    """Set abstraction: FPS + radius candidate set + fused PointConv kernel.

    radius(..., max_num_neighbors=64): with n <= 64 per graph the candidate
    set is all n points of the graph, validity-masked inside the kernel by
    the radius test.
    """
    m = int(math.ceil(ratio * n))
    pos_g = pos.reshape(B, n, 3)
    x_g = None if x is None else x.reshape(B, n, -1)

    idx = jax.vmap(lambda p: fps_one(p, m))(pos_g)                    # (B, m)
    center_pos = jax.vmap(lambda p, i: p[i])(pos_g, idx)              # (B, m, 3)

    out = sa_conv(x_g, pos_g, center_pos, r, layer_params)            # (B, m, Cout)
    Mc = B * m
    return out.reshape(Mc, -1), center_pos.reshape(Mc, 3), m


# ----------------------------------------------------------------------------
# Deterministic parameter init (synthetic; matches module __init__ shapes)
# ----------------------------------------------------------------------------

def init_mlp(key, channels):
    layers = []
    for i in range(1, len(channels)):
        cin, cout = channels[i - 1], channels[i]
        key, k1, k2, k3, k4, k5, k6 = jax.random.split(key, 7)
        w = jax.random.normal(k1, (cin, cout), jnp.float32) / jnp.sqrt(float(cin))
        b = 0.02 * jax.random.normal(k2, (cout,), jnp.float32)
        gamma = 1.0 + 0.1 * jax.random.normal(k3, (cout,), jnp.float32)
        beta = 0.1 * jax.random.normal(k4, (cout,), jnp.float32)
        run_mean = 0.1 * jax.random.normal(k5, (cout,), jnp.float32)
        run_var = 1.0 + 0.1 * jnp.abs(jax.random.normal(k6, (cout,), jnp.float32))
        # eval-mode BatchNorm folded into per-channel scale/shift
        scale = gamma / jnp.sqrt(run_var + 1e-5)
        shift = beta - run_mean * scale
        layers.append((w, b, scale, shift))
    return key, layers


def init_linear(key, cin, cout):
    key, k1, k2 = jax.random.split(key, 3)
    w = jax.random.normal(k1, (cin, cout), jnp.float32) / jnp.sqrt(float(cin))
    b = 0.02 * jax.random.normal(k2, (cout,), jnp.float32)
    return key, (w, b)


def init_params(key, output_keys):
    params = {}
    key, params["sa1"] = init_mlp(key, [3, 64, 64, 128])
    key, params["sa2"] = init_mlp(key, [128 + 3, 128, 128, 256])
    key, params["sa3"] = init_mlp(key, [256 + 3, 256, 512, 1024])
    key, params["lin1"] = init_linear(key, 1024, 512)
    key, params["lin2"] = init_linear(key, 512, 256)
    params["lin3"] = {}
    for k in output_keys:
        key, params["lin3"][k] = init_linear(key, 256, 10)
    return params


# ----------------------------------------------------------------------------
# Full forward
# ----------------------------------------------------------------------------

def pointnet_forward(pos, B, params):
    N = pos.shape[0]
    n = N // B
    # sa0_out: data.x is None (sa1 MLP input width is 3 = relative positions)
    x1, pos1, m1 = sa_module(None, pos, B, n, ratio=0.5, r=0.2,
                             layer_params=params["sa1"])
    x2, pos2, m2 = sa_module(x1, pos1, B, m1, ratio=0.25, r=0.4,
                             layer_params=params["sa2"])
    return global_sa_and_head(x2, pos2, B, params["sa3"],
                              params["lin1"], params["lin2"], params["lin3"])


if __name__ == "__main__":
    B = 2                      # graphs in the batch
    n_per_graph = 32
    N = B * n_per_graph

    key = jax.random.PRNGKey(0)
    key, kpos = jax.random.split(key)
    pos = jax.random.uniform(kpos, (N, 3), jnp.float32)               # data.pos
    batch = jnp.repeat(jnp.arange(B, dtype=jnp.int32), n_per_graph)   # data.batch
    # data.x = None (consistent with MLP([3, 64, 64, 128]) in sa1)

    output_keys = ("cls", "aux")
    params = init_params(jax.random.PRNGKey(0), output_keys)

    out = pointnet_forward(pos, B, params)
    for k in output_keys:
        jax.block_until_ready(out[k])
        assert out[k].shape == (B, 10), out[k].shape
    _ = batch  # batch bookkeeping is implicit (contiguous equal-sized graphs)
    print("KERNEL_OK")
</pallas_src>

<mosaic_0001>
module attributes {stable_mosaic.version = 11 : i64} {
  func.func @kernel(%arg0: i32, %arg1: i32, %arg2: memref<1x16x3xf32, #tpu.memory_space<vmem>>, %arg3: memref<1x32x3xf32, #tpu.memory_space<vmem>>, %arg4: memref<3x64xf32, #tpu.memory_space<vmem>>, %arg5: memref<1x64xf32, #tpu.memory_space<vmem>>, %arg6: memref<64x64xbf16, #tpu.memory_space<vmem>>, %arg7: memref<1x64xf32, #tpu.memory_space<vmem>>, %arg8: memref<64x128xbf16, #tpu.memory_space<vmem>>, %arg9: memref<1x128xf32, #tpu.memory_space<vmem>>, %arg10: memref<1x128xf32, #tpu.memory_space<vmem>>, %arg11: memref<1x128xf32, #tpu.memory_space<vmem>>, %arg12: memref<1x16x128xf32, #tpu.memory_space<vmem>>) attributes {dimension_semantics = [#tpu.dimension_semantics<parallel>, #tpu.dimension_semantics<parallel>], iteration_bounds = array<i64: 2, 1>, scalar_prefetch = 0 : i64, scratch_operands = 0 : i64, tpu.core_type = #tpu.core_type<tc>, window_params = [{transform_indices = @transform_0, window_bounds = array<i64: 1, 16, 3>}, {transform_indices = @transform_1, window_bounds = array<i64: 1, 32, 3>}, {pipeline_mode = #tpu.pipeline_mode<synchronous>, transform_indices = @transform_2, window_bounds = array<i64: 3, 64>}, {pipeline_mode = #tpu.pipeline_mode<synchronous>, transform_indices = @transform_3, window_bounds = array<i64: 1, 64>}, {pipeline_mode = #tpu.pipeline_mode<synchronous>, transform_indices = @transform_4, window_bounds = array<i64: 64, 64>}, {pipeline_mode = #tpu.pipeline_mode<synchronous>, transform_indices = @transform_5, window_bounds = array<i64: 1, 64>}, {pipeline_mode = #tpu.pipeline_mode<synchronous>, transform_indices = @transform_6, window_bounds = array<i64: 64, 128>}, {pipeline_mode = #tpu.pipeline_mode<synchronous>, transform_indices = @transform_7, window_bounds = array<i64: 1, 128>}, {pipeline_mode = #tpu.pipeline_mode<synchronous>, transform_indices = @transform_8, window_bounds = array<i64: 1, 128>}, {pipeline_mode = #tpu.pipeline_mode<synchronous>, transform_indices = @transform_9, window_bounds = array<i64: 1, 128>}, {transform_indices = @transform_10, window_bounds = array<i64: 1, 16, 128>}]} {
    %c0 = arith.constant 0 : index
    %c0_0 = arith.constant 0 : index
    %c0_1 = arith.constant 0 : index
    %0 = vector.load %arg2[%c0, %c0_0, %c0_1] : memref<1x16x3xf32, #tpu.memory_space<vmem>>, vector<1x16x3xf32>
    %1 = vector.shape_cast %0 : vector<1x16x3xf32> to vector<16x3xf32>
    %c0_2 = arith.constant 0 : index
    %c0_3 = arith.constant 0 : index
    %c0_4 = arith.constant 0 : index
    %2 = vector.load %arg3[%c0_2, %c0_3, %c0_4] : memref<1x32x3xf32, #tpu.memory_space<vmem>>, vector<1x32x3xf32>
    %3 = vector.shape_cast %2 : vector<1x32x3xf32> to vector<32x3xf32>
    %4 = vector.shape_cast %3 : vector<32x3xf32> to vector<1x32x3xf32>
    %5 = vector.shape_cast %1 : vector<16x3xf32> to vector<16x1x3xf32>
    %6 = vector.broadcast %4 : vector<1x32x3xf32> to vector<16x32x3xf32>
    %7 = vector.broadcast %5 : vector<16x1x3xf32> to vector<16x32x3xf32>
    %8 = arith.subf %6, %7 : vector<16x32x3xf32>
    %9 = arith.mulf %8, %8 : vector<16x32x3xf32>
    %cst = arith.constant dense<0.000000e+00> : vector<16x32xf32>
    %10 = vector.multi_reduction <add>, %9, %cst [2] : vector<16x32x3xf32> to vector<16x32xf32>
    %11 = tpu.iota {dimensions = array<i32: 1>} : vector<16x32xi32>
    %cst_5 = arith.constant 4.000000e-02 : f32
    %12 = vector.broadcast %cst_5 : f32 to vector<16x32xf32>
    %13 = arith.cmpf ole, %10, %12 : vector<16x32xf32>
    %c32_i32 = arith.constant 32 : i32
    %14 = vector.broadcast %c32_i32 : i32 to vector<16x32xi32>
    %15 = arith.cmpi slt, %11, %14 : vector<16x32xi32>
    %16 = arith.andi %13, %15 : vector<16x32xi1>
    %cst_6 = arith.constant 0.000000e+00 : f32
    %cst_7 = arith.constant -1.000000e+30 : f32
    %17 = vector.broadcast %cst_6 : f32 to vector<16x32xf32>
    %18 = vector.broadcast %cst_7 : f32 to vector<16x32xf32>
    %19 = arith.select %16, %17, %18 : vector<16x32xi1>, vector<16x32xf32>
    %20 = vector.shape_cast %8 : vector<16x32x3xf32> to vector<512x3xf32>
    %c0_8 = arith.constant 0 : index
    %c0_9 = arith.constant 0 : index
    %21 = vector.load %arg4[%c0_8, %c0_9] : memref<3x64xf32, #tpu.memory_space<vmem>>, vector<3x64xf32>
    %cst_10 = arith.constant dense<0.000000e+00> : vector<512x64xf32>
    %22 = tpu.matmul %20, %21, %cst_10 {dimension_numbers = #tpu.dot_dimension_numbers<[1], [0], [0], [1], [0, 0, 1, 1], [], []>} : vector<512x3xf32>, vector<3x64xf32>, vector<512x64xf32> -> vector<512x64xf32>
    %23 = vector.shape_cast %22 : vector<512x64xf32> to vector<16x32x64xf32>
    %c0_11 = arith.constant 0 : index
    %c0_12 = arith.constant 0 : index
    %24 = vector.load %arg5[%c0_11, %c0_12] : memref<1x64xf32, #tpu.memory_space<vmem>>, vector<1x64xf32>
    %25 = vector.shape_cast %24 : vector<1x64xf32> to vector<1x1x64xf32>
    %26 = vector.broadcast %25 : vector<1x1x64xf32> to vector<16x32x64xf32>
    %27 = arith.addf %23, %26 : vector<16x32x64xf32>
    %cst_13 = arith.constant 0.000000e+00 : f32
    %28 = vector.broadcast %cst_13 : f32 to vector<16x32x64xf32>
    %29 = arith.maximumf %27, %28 : vector<16x32x64xf32>
    %30 = vector.shape_cast %29 : vector<16x32x64xf32> to vector<512x64xf32>
    %31 = arith.truncf %30 : vector<512x64xf32> to vector<512x64xbf16>
    %c0_14 = arith.constant 0 : index
    %c0_15 = arith.constant 0 : index
    %32 = vector.load %arg6[%c0_14, %c0_15] : memref<64x64xbf16, #tpu.memory_space<vmem>>, vector<64x64xbf16>
    %cst_16 = arith.constant dense<0.000000e+00> : vector<512x64xf32>
    %33 = tpu.matmul %31, %32, %cst_16 {dimension_numbers = #tpu.dot_dimension_numbers<[1], [0], [0], [1], [0, 0, 1, 1], [], []>} : vector<512x64xbf16>, vector<64x64xbf16>, vector<512x64xf32> -> vector<512x64xf32>
    %c0_17 = arith.constant 0 : index
    %c0_18 = arith.constant 0 : index
    %34 = vector.load %arg7[%c0_17, %c0_18] : memref<1x64xf32, #tpu.memory_space<vmem>>, vector<1x64xf32>
    %35 = vector.broadcast %34 : vector<1x64xf32> to vector<512x64xf32>
    %36 = arith.addf %33, %35 : vector<512x64xf32>
    %cst_19 = arith.constant 0.000000e+00 : f32
    %37 = vector.broadcast %cst_19 : f32 to vector<512x64xf32>
    %38 = arith.maximumf %36, %37 : vector<512x64xf32>
    %39 = arith.truncf %38 : vector<512x64xf32> to vector<512x64xbf16>
    %c0_20 = arith.constant 0 : index
    %c0_21 = arith.constant 0 : index
    %40 = vector.load %arg8[%c0_20, %c0_21] : memref<64x128xbf16, #tpu.memory_space<vmem>>, vector<64x128xbf16>
    %cst_22 = arith.constant dense<0.000000e+00> : vector<512x128xf32>
    %41 = tpu.matmul %39, %40, %cst_22 {dimension_numbers = #tpu.dot_dimension_numbers<[1], [0], [0], [1], [0, 0, 1, 1], [], []>} : vector<512x64xbf16>, vector<64x128xbf16>, vector<512x128xf32> -> vector<512x128xf32>
    %c0_23 = arith.constant 0 : index
    %c0_24 = arith.constant 0 : index
    %42 = vector.load %arg9[%c0_23, %c0_24] : memref<1x128xf32, #tpu.memory_space<vmem>>, vector<1x128xf32>
    %43 = vector.broadcast %42 : vector<1x128xf32> to vector<512x128xf32>
    %44 = arith.addf %41, %43 : vector<512x128xf32>
    %cst_25 = arith.constant 0.000000e+00 : f32
    %45 = vector.broadcast %cst_25 : f32 to vector<512x128xf32>
    %46 = arith.maximumf %44, %45 : vector<512x128xf32>
    %c0_26 = arith.constant 0 : index
    %c0_27 = arith.constant 0 : index
    %47 = vector.load %arg10[%c0_26, %c0_27] : memref<1x128xf32, #tpu.memory_space<vmem>>, vector<1x128xf32>
    %48 = vector.broadcast %47 : vector<1x128xf32> to vector<512x128xf32>
    %49 = arith.mulf %46, %48 : vector<512x128xf32>
    %c0_28 = arith.constant 0 : index
    %c0_29 = arith.constant 0 : index
    %50 = vector.load %arg11[%c0_28, %c0_29] : memref<1x128xf32, #tpu.memory_space<vmem>>, vector<1x128xf32>
    %51 = vector.broadcast %50 : vector<1x128xf32> to vector<512x128xf32>
    %52 = arith.addf %49, %51 : vector<512x128xf32>
    %53 = vector.shape_cast %52 : vector<512x128xf32> to vector<16x32x128xf32>
    %54 = vector.shape_cast %19 : vector<16x32xf32> to vector<16x32x1xf32>
    %55 = vector.broadcast %54 : vector<16x32x1xf32> to vector<16x32x128xf32>
    %56 = arith.addf %53, %55 : vector<16x32x128xf32>
    %cst_30 = arith.constant dense<0xFF800000> : vector<16x128xf32>
    %57 = vector.multi_reduction <maximumf>, %56, %cst_30 [1] : vector<16x32x128xf32> to vector<16x128xf32>
    %c0_31 = arith.constant 0 : index
    %c0_32 = arith.constant 0 : index
    %c0_33 = arith.constant 0 : index
    %58 = vector.load %arg12[%c0_31, %c0_32, %c0_33] : memref<1x16x128xf32, #tpu.memory_space<vmem>>, vector<1x16x128xf32>
    %59 = vector.shape_cast %58 : vector<1x16x128xf32> to vector<16x128xf32>
    %60 = vector.shape_cast %57 : vector<16x128xf32> to vector<1x16x128xf32>
    tpu.vector_store %arg12[%c0_31, %c0_32, %c0_33], %60 {strides = array<i32>} : memref<1x16x128xf32, #tpu.memory_space<vmem>>, vector<1x16x128xf32>,
    return
  }
  func.func @transform_0(%arg0: i32, %arg1: i32) -> (i32, i32, i32) {
    %c0_i32 = arith.constant 0 : i32
    %c0_i32_0 = arith.constant 0 : i32
    return %arg0, %arg1, %c0_i32 : i32, i32, i32
  }
  func.func @transform_1(%arg0: i32, %arg1: i32) -> (i32, i32, i32) {
    %c0_i32 = arith.constant 0 : i32
    %c0_i32_0 = arith.constant 0 : i32
    %c0_i32_1 = arith.constant 0 : i32
    return %arg0, %c0_i32, %c0_i32_0 : i32, i32, i32
  }
  func.func @transform_2(%arg0: i32, %arg1: i32) -> (i32, i32) {
    %c0_i32 = arith.constant 0 : i32
    %c0_i32_0 = arith.constant 0 : i32
    %c0_i32_1 = arith.constant 0 : i32
    return %c0_i32, %c0_i32_0 : i32, i32
  }
  func.func @transform_3(%arg0: i32, %arg1: i32) -> (i32, i32) {
    %c0_i32 = arith.constant 0 : i32
    %c0_i32_0 = arith.constant 0 : i32
    %c0_i32_1 = arith.constant 0 : i32
    return %c0_i32, %c0_i32_0 : i32, i32
  }
  func.func @transform_4(%arg0: i32, %arg1: i32) -> (i32, i32) {
    %c0_i32 = arith.constant 0 : i32
    %c0_i32_0 = arith.constant 0 : i32
    %c0_i32_1 = arith.constant 0 : i32
    return %c0_i32, %c0_i32_0 : i32, i32
  }
  func.func @transform_5(%arg0: i32, %arg1: i32) -> (i32, i32) {
    %c0_i32 = arith.constant 0 : i32
    %c0_i32_0 = arith.constant 0 : i32
    %c0_i32_1 = arith.constant 0 : i32
    return %c0_i32, %c0_i32_0 : i32, i32
  }
  func.func @transform_6(%arg0: i32, %arg1: i32) -> (i32, i32) {
    %c0_i32 = arith.constant 0 : i32
    %c0_i32_0 = arith.constant 0 : i32
    %c0_i32_1 = arith.constant 0 : i32
    return %c0_i32, %c0_i32_0 : i32, i32
  }
  func.func @transform_7(%arg0: i32, %arg1: i32) -> (i32, i32) {
    %c0_i32 = arith.constant 0 : i32
    %c0_i32_0 = arith.constant 0 : i32
    %c0_i32_1 = arith.constant 0 : i32
    return %c0_i32, %c0_i32_0 : i32, i32
  }
  func.func @transform_8(%arg0: i32, %arg1: i32) -> (i32, i32) {
    %c0_i32 = arith.constant 0 : i32
    %c0_i32_0 = arith.constant 0 : i32
    %c0_i32_1 = arith.constant 0 : i32
    return %c0_i32, %c0_i32_0 : i32, i32
  }
  func.func @transform_9(%arg0: i32, %arg1: i32) -> (i32, i32) {
    %c0_i32 = arith.constant 0 : i32
    %c0_i32_0 = arith.constant 0 : i32
    %c0_i32_1 = arith.constant 0 : i32
    return %c0_i32, %c0_i32_0 : i32, i32
  }
  func.func @transform_10(%arg0: i32, %arg1: i32) -> (i32, i32, i32) {
    %c0_i32 = arith.constant 0 : i32
    %c0_i32_0 = arith.constant 0 : i32
    return %arg0, %arg1, %c0_i32 : i32, i32, i32
  }
}

</mosaic_0001>

<llo_original>
// kernel: tpu_custom_call.1
$region0: #{tpu_custom_call.1}
  #allocation0 [shape = 'u32[]', space=smem, size = 0x4, offset = 0x4, fixed_abs, tag = 'smem constant byte address 0x4 - core index']
  #allocation1 [shape = 'u32[72,128]{1,0:T(1,128)}', space=vmem, size = 0x9000, scoped, tag = 'internal scratch']
  %s0 = inlined_call_operand.vmem [shape: f32[2,16,3], index: 0, kind: input, shape index: {}]
  %s1 = inlined_call_operand.vmem [shape: f32[2,32,3], index: 1, kind: input, shape index: {}]
  %s2 = inlined_call_operand.vmem [shape: f32[3,64], index: 2, kind: input, shape index: {}]
  %s3 = inlined_call_operand.vmem [shape: f32[1,64], index: 3, kind: input, shape index: {}]
  %s4 = inlined_call_operand.vmem [shape: bf16[64,64], index: 4, kind: input, shape index: {}]
  %s5 = inlined_call_operand.vmem [shape: f32[1,64], index: 5, kind: input, shape index: {}]
  %s6 = inlined_call_operand.vmem [shape: bf16[64,128], index: 6, kind: input, shape index: {}]
  %s7 = inlined_call_operand.vmem [shape: f32[1,128], index: 7, kind: input, shape index: {}]
  %s8 = inlined_call_operand.vmem [shape: f32[1,128], index: 8, kind: input, shape index: {}]
  %s9 = inlined_call_operand.vmem [shape: f32[1,128], index: 9, kind: input, shape index: {}]
  %s10 = inlined_call_operand.hbm [shape: f32[2,16,128], index: 10, kind: output, shape index: {}]
  %s11 = sld [smem:[#allocation0]]
  $region73: #{tpu_custom_call.1} parent=0
    _
  %s13 = ssub.s32 1, %s11
  %s14 = scalar_select 0, %s13, %s11
  $region1: #{tpu_custom_call.1} parent=0
    #allocation2 [shape = 'u8[16384]{0}', space=vmem, size = 0x4000, scoped, tag = 'output window, operand 0']
    #allocation3 [shape = 's32[2]{0}', space=sflag, size = 0x8, scoped, tag = 'scoped memory for tpu_custom_call.1']
    %15 = vsyncpa [#allocation3], 0
    %s16 = scalar_lea.sflag [#allocation3], 1
    %17 = vsyncpa %s16, 0
    loop: start=0, step=1, limit=4
    $region2: #{tpu_custom_call.1} parent=1 // loop_pre_header
      _
    $region3: #{tpu_custom_call.1} parent=1 // loop_header
      %s19 = sphi 0, %s23
      %p20 = scmp.ge.s32.totalorder %s19, 4
      %s26 = sphi 0, %s38
      %s27 = sphi 0, %s34
      %s28 = sphi 0, %s26
      %s29 = sphi 0, %s27
      %s30 = sphi 0, %s28
      %s31 = sphi 0, %s29
      %s43 = sphi 0, %s45
      %s46 = sphi 0, %s43
      %s47 = sphi 0, %s46
      %s63 = sphi 0, %s47
      %s69 = sphi 0, %s71
      %s72 = sphi 0, %s69
      %s73 = sphi 0, %s72
      %s89 = sphi 0, %s73
      %s93 = sphi 0, %s93
      %s95 = sphi 0, %s93
      %s96 = sphi 0, %s95
      %s110 = sphi 0, %s96
      %s114 = sphi 0, %s114
      %s116 = sphi 0, %s114
      %s117 = sphi 0, %s116
      %s131 = sphi 0, %s117
      %s135 = sphi 0, %s135
      %s137 = sphi 0, %s135
      %s138 = sphi 0, %s137
      %s152 = sphi 0, %s138
      %s156 = sphi 0, %s156
      %s158 = sphi 0, %s156
      %s159 = sphi 0, %s158
      %s173 = sphi 0, %s159
      %s177 = sphi 0, %s177
      %s179 = sphi 0, %s177
      %s180 = sphi 0, %s179
      %s194 = sphi 0, %s180
      %s198 = sphi 0, %s198
      %s200 = sphi 0, %s198
      %s201 = sphi 0, %s200
      %s215 = sphi 0, %s201
      %s219 = sphi 0, %s219
      %s221 = sphi 0, %s219
      %s222 = sphi 0, %s221
      %s236 = sphi 0, %s222
      %s240 = sphi 0, %s240
      %s242 = sphi 0, %s240
      %s243 = sphi 0, %s242
      %s257 = sphi 0, %s243
      %s265 = sphi 0, %s267
      %s268 = sphi 0, %s265
      %s269 = sphi 0, %s268
      %s285 = sphi 0, %s269
    $region4: #{tpu_custom_call.1} parent=1 // loop_header_branch
      %22 = sbr.rel (%p20) target = $region8
    $region5: #{tpu_custom_call.1} parent=1 // loop_body
      %s24 = ssub.s32 %s19, 1
      %s25 = ssub.s32 %s19, 2
      %s32 = sadd.s32 1, %s27
      %p33 = scmp.ge.s32.totalorder %s32, 1
      %s34 = scalar_select %p33, 0, %s32
      %s35 = sadd.s32 1, %s26
      %s36 = scalar_select %p33, %s35, %s26
      %p37 = scmp.ge.s32.totalorder %s36, 2
      %s38 = scalar_select %p37, 0, %s36
      %s39 = ssub.s32 %s26, %s38
      %s40 = ssub.s32 %s27, %s34
      %s41 = sor.u32 %s39, %s40
      %p42 = scmp.eq.s32.totalorder %s41, 0
      %s44 = sadd.s32 %s43, 1
      %s45 = scalar_select %p42, %s43, %s44
      %p48 = pneg %p42
      %p49 = scmp.eq.s32.totalorder %s19, 1
      %p50 = por %p48, %p49
      %p51 = scmp.ne.s32.totalorder %s43, %s46
      %p52 = scmp.eq.s32.totalorder %s19, 0
      %p53 = por %p51, %p52
      %p54 = scmp.ne.s32.totalorder %s43, %s46
      %p55 = scmp.eq.s32.totalorder %s24, 1
      %p56 = por %p54, %p55
      %p57 = scmp.ne.s32.totalorder %s46, %s47
      %p58 = scmp.eq.s32.totalorder %s24, 0
      %p59 = por %p57, %p58
      %p60 = scmp.ne.s32.totalorder %s46, %s47
      %p61 = scmp.eq.s32.totalorder %s25, 1
      %p62 = por %p60, %p61
      %p64 = scmp.ne.s32.totalorder %s47, %s63
      %p65 = scmp.eq.s32.totalorder %s25, 0
      %p66 = por %p64, %p65
      %s67 = ssub.s32 %s26, %s38
      %p68 = scmp.eq.s32.totalorder %s67, 0
      %s70 = sadd.s32 %s69, 1
      %s71 = scalar_select %p68, %s69, %s70
      %p74 = pneg %p68
      %p75 = scmp.eq.s32.totalorder %s19, 1
      %p76 = por %p74, %p75
      %p77 = scmp.ne.s32.totalorder %s69, %s72
      %p78 = scmp.eq.s32.totalorder %s19, 0
      %p79 = por %p77, %p78
      %p80 = scmp.ne.s32.totalorder %s69, %s72
      %p81 = scmp.eq.s32.totalorder %s24, 1
      %p82 = por %p80, %p81
      %p83 = scmp.ne.s32.totalorder %s72, %s73
      %p84 = scmp.eq.s32.totalorder %s24, 0
      %p85 = por %p83, %p84
      %p86 = scmp.ne.s32.totalorder %s72, %s73
      %p87 = scmp.eq.s32.totalorder %s25, 1
      %p88 = por %p86, %p87
      %p90 = scmp.ne.s32.totalorder %s73, %s89
      %p91 = scmp.eq.s32.totalorder %s25, 0
      %p92 = por %p90, %p91
      %s94 = sadd.s32 %s93, 1
      %p97 = scmp.eq.s32.totalorder %s19, 1
      %p98 = scmp.ne.s32.totalorder %s93, %s95
      %p99 = scmp.eq.s32.totalorder %s19, 0
      %p100 = por %p98, %p99
      %p101 = scmp.ne.s32.totalorder %s93, %s95
      %p102 = scmp.eq.s32.totalorder %s24, 1
      %p103 = por %p101, %p102
      %p104 = scmp.ne.s32.totalorder %s95, %s96
      %p105 = scmp.eq.s32.totalorder %s24, 0
      %p106 = por %p104, %p105
      %p107 = scmp.ne.s32.totalorder %s95, %s96
      %p108 = scmp.eq.s32.totalorder %s25, 1
      %p109 = por %p107, %p108
      %p111 = scmp.ne.s32.totalorder %s96, %s110
      %p112 = scmp.eq.s32.totalorder %s25, 0
      %p113 = por %p111, %p112
      %s115 = sadd.s32 %s114, 1
      %p118 = scmp.eq.s32.totalorder %s19, 1
      %p119 = scmp.ne.s32.totalorder %s114, %s116
      %p120 = scmp.eq.s32.totalorder %s19, 0
      %p121 = por %p119, %p120
      %p122 = scmp.ne.s32.totalorder %s114, %s116
      %p123 = scmp.eq.s32.totalorder %s24, 1
      %p124 = por %p122, %p123
      %p125 = scmp.ne.s32.totalorder %s116, %s117
      %p126 = scmp.eq.s32.totalorder %s24, 0
      %p127 = por %p125, %p126
      %p128 = scmp.ne.s32.totalorder %s116, %s117
      %p129 = scmp.eq.s32.totalorder %s25, 1
      %p130 = por %p128, %p129
      %p132 = scmp.ne.s32.totalorder %s117, %s131
      %p133 = scmp.eq.s32.totalorder %s25, 0
      %p134 = por %p132, %p133
      %s136 = sadd.s32 %s135, 1
      %p139 = scmp.eq.s32.totalorder %s19, 1
      %p140 = scmp.ne.s32.totalorder %s135, %s137
      %p141 = scmp.eq.s32.totalorder %s19, 0
      %p142 = por %p140, %p141
      %p143 = scmp.ne.s32.totalorder %s135, %s137
      %p144 = scmp.eq.s32.totalorder %s24, 1
      %p145 = por %p143, %p144
      %p146 = scmp.ne.s32.totalorder %s137, %s138
      %p147 = scmp.eq.s32.totalorder %s24, 0
      %p148 = por %p146, %p147
      %p149 = scmp.ne.s32.totalorder %s137, %s138
      %p150 = scmp.eq.s32.totalorder %s25, 1
      %p151 = por %p149, %p150
      %p153 = scmp.ne.s32.totalorder %s138, %s152
      %p154 = scmp.eq.s32.totalorder %s25, 0
      %p155 = por %p153, %p154
      %s157 = sadd.s32 %s156, 1
      %p160 = scmp.eq.s32.totalorder %s19, 1
      %p161 = scmp.ne.s32.totalorder %s156, %s158
      %p162 = scmp.eq.s32.totalorder %s19, 0
      %p163 = por %p161, %p162
      %p164 = scmp.ne.s32.totalorder %s156, %s158
      %p165 = scmp.eq.s32.totalorder %s24, 1
      %p166 = por %p164, %p165
      %p167 = scmp.ne.s32.totalorder %s158, %s159
      %p168 = scmp.eq.s32.totalorder %s24, 0
      %p169 = por %p167, %p168
      %p170 = scmp.ne.s32.totalorder %s158, %s159
      %p171 = scmp.eq.s32.totalorder %s25, 1
      %p172 = por %p170, %p171
      %p174 = scmp.ne.s32.totalorder %s159, %s173
      %p175 = scmp.eq.s32.totalorder %s25, 0
      %p176 = por %p174, %p175
      %s178 = sadd.s32 %s177, 1
      %p181 = scmp.eq.s32.totalorder %s19, 1
      %p182 = scmp.ne.s32.totalorder %s177, %s179
      %p183 = scmp.eq.s32.totalorder %s19, 0
      %p184 = por %p182, %p183
      %p185 = scmp.ne.s32.totalorder %s177, %s179
      %p186 = scmp.eq.s32.totalorder %s24, 1
      %p187 = por %p185, %p186
      %p188 = scmp.ne.s32.totalorder %s179, %s180
      %p189 = scmp.eq.s32.totalorder %s24, 0
      %p190 = por %p188, %p189
      %p191 = scmp.ne.s32.totalorder %s179, %s180
      %p192 = scmp.eq.s32.totalorder %s25, 1
      %p193 = por %p191, %p192
      %p195 = scmp.ne.s32.totalorder %s180, %s194
      %p196 = scmp.eq.s32.totalorder %s25, 0
      %p197 = por %p195, %p196
      %s199 = sadd.s32 %s198, 1
      %p202 = scmp.eq.s32.totalorder %s19, 1
      %p203 = scmp.ne.s32.totalorder %s198, %s200
      %p204 = scmp.eq.s32.totalorder %s19, 0
      %p205 = por %p203, %p204
      %p206 = scmp.ne.s32.totalorder %s198, %s200
      %p207 = scmp.eq.s32.totalorder %s24, 1
      %p208 = por %p206, %p207
      %p209 = scmp.ne.s32.totalorder %s200, %s201
      %p210 = scmp.eq.s32.totalorder %s24, 0
      %p211 = por %p209, %p210
      %p212 = scmp.ne.s32.totalorder %s200, %s201
      %p213 = scmp.eq.s32.totalorder %s25, 1
      %p214 = por %p212, %p213
      %p216 = scmp.ne.s32.totalorder %s201, %s215
      %p217 = scmp.eq.s32.totalorder %s25, 0
      %p218 = por %p216, %p217
      %s220 = sadd.s32 %s219, 1
      %p223 = scmp.eq.s32.totalorder %s19, 1
      %p224 = scmp.ne.s32.totalorder %s219, %s221
      %p225 = scmp.eq.s32.totalorder %s19, 0
      %p226 = por %p224, %p225
      %p227 = scmp.ne.s32.totalorder %s219, %s221
      %p228 = scmp.eq.s32.totalorder %s24, 1
      %p229 = por %p227, %p228
      %p230 = scmp.ne.s32.totalorder %s221, %s222
      %p231 = scmp.eq.s32.totalorder %s24, 0
      %p232 = por %p230, %p231
      %p233 = scmp.ne.s32.totalorder %s221, %s222
      %p234 = scmp.eq.s32.totalorder %s25, 1
      %p235 = por %p233, %p234
      %p237 = scmp.ne.s32.totalorder %s222, %s236
      %p238 = scmp.eq.s32.totalorder %s25, 0
      %p239 = por %p237, %p238
      %s241 = sadd.s32 %s240, 1
      %p244 = scmp.eq.s32.totalorder %s19, 1
      %p245 = scmp.ne.s32.totalorder %s240, %s242
      %p246 = scmp.eq.s32.totalorder %s19, 0
      %p247 = por %p245, %p246
      %p248 = scmp.ne.s32.totalorder %s240, %s242
      %p249 = scmp.eq.s32.totalorder %s24, 1
      %p250 = por %p248, %p249
      %p251 = scmp.ne.s32.totalorder %s242, %s243
      %p252 = scmp.eq.s32.totalorder %s24, 0
      %p253 = por %p251, %p252
      %p254 = scmp.ne.s32.totalorder %s242, %s243
      %p255 = scmp.eq.s32.totalorder %s25, 1
      %p256 = por %p254, %p255
      %p258 = scmp.ne.s32.totalorder %s243, %s257
      %p259 = scmp.eq.s32.totalorder %s25, 0
      %p260 = por %p258, %p259
      %s261 = ssub.s32 %s26, %s38
      %s262 = ssub.s32 %s27, %s34
      %s263 = sor.u32 %s261, %s262
      %p264 = scmp.eq.s32.totalorder %s263, 0
      %s266 = sadd.s32 %s265, 1
      %s267 = scalar_select %p264, %s265, %s266
      %p270 = pneg %p264
      %p271 = scmp.eq.s32.totalorder %s19, 1
      %p272 = por %p270, %p271
      %p273 = scmp.ne.s32.totalorder %s265, %s268
      %p274 = scmp.eq.s32.totalorder %s19, 0
      %p275 = por %p273, %p274
      %p276 = scmp.ne.s32.totalorder %s265, %s268
      %p277 = scmp.eq.s32.totalorder %s24, 1
      %p278 = por %p276, %p277
      %p279 = scmp.ne.s32.totalorder %s268, %s269
      %p280 = scmp.eq.s32.totalorder %s24, 0
      %p281 = por %p279, %p280
      %p282 = scmp.ne.s32.totalorder %s268, %s269
      %p283 = scmp.eq.s32.totalorder %s25, 1
      %p284 = por %p282, %p283
      %p286 = scmp.ne.s32.totalorder %s269, %s285
      %p287 = scmp.eq.s32.totalorder %s25, 0
      %p288 = por %p286, %p287
      %p289 = scmp.le.s32.totalorder 1, %s19
      %p290 = scmp.lt.s32.totalorder %s19, 3
      %p291 = pnand %p289, %p290
      %p292 = pneg %p291
      // Predicated region
      $region9: #{tpu_custom_call.1} parent=5 // pred_check
        _
      $region10: #{tpu_custom_call.1} parent=5 // pred_check_branch
        %294 = sbr.rel (%p291) target = $region12
      $region11: #{tpu_custom_call.1} parent=5 // pred_region
        %s295 = ssub.s32 %s19, 1
        // Predicated region
        $region13: #{tpu_custom_call.1} parent=11 // pred_check
          %p296 = pneg %p106
        $region14: #{tpu_custom_call.1} parent=11 // pred_check_branch
          %298 = sbr.rel (%p296) target = $region16
        $region15: #{tpu_custom_call.1} parent=11 // pred_region
          _
        $region16: #{tpu_custom_call.1} parent=11 // pred_fallthru
          _
        // Predicated region
        $region17: #{tpu_custom_call.1} parent=11 // pred_check
          %p299 = pneg %p127
        $region18: #{tpu_custom_call.1} parent=11 // pred_check_branch
          %301 = sbr.rel (%p299) target = $region20
        $region19: #{tpu_custom_call.1} parent=11 // pred_region
          _
        $region20: #{tpu_custom_call.1} parent=11 // pred_fallthru
          _
        // Predicated region
        $region21: #{tpu_custom_call.1} parent=11 // pred_check
          %p302 = pneg %p148
        $region22: #{tpu_custom_call.1} parent=11 // pred_check_branch
          %304 = sbr.rel (%p302) target = $region24
        $region23: #{tpu_custom_call.1} parent=11 // pred_region
          _
        $region24: #{tpu_custom_call.1} parent=11 // pred_fallthru
          _
        // Predicated region
        $region25: #{tpu_custom_call.1} parent=11 // pred_check
          %p305 = pneg %p169
        $region26: #{tpu_custom_call.1} parent=11 // pred_check_branch
          %307 = sbr.rel (%p305) target = $region28
        $region27: #{tpu_custom_call.1} parent=11 // pred_region
          _
        $region28: #{tpu_custom_call.1} parent=11 // pred_fallthru
          _
        // Predicated region
        $region29: #{tpu_custom_call.1} parent=11 // pred_check
          %p308 = pneg %p190
        $region30: #{tpu_custom_call.1} parent=11 // pred_check_branch
          %310 = sbr.rel (%p308) target = $region32
        $region31: #{tpu_custom_call.1} parent=11 // pred_region
          _
        $region32: #{tpu_custom_call.1} parent=11 // pred_fallthru
          _
        // Predicated region
        $region33: #{tpu_custom_call.1} parent=11 // pred_check
          %p311 = pneg %p211
        $region34: #{tpu_custom_call.1} parent=11 // pred_check_branch
          %313 = sbr.rel (%p311) target = $region36
        $region35: #{tpu_custom_call.1} parent=11 // pred_region
          _
        $region36: #{tpu_custom_call.1} parent=11 // pred_fallthru
          _
        // Predicated region
        $region37: #{tpu_custom_call.1} parent=11 // pred_check
          %p314 = pneg %p232
        $region38: #{tpu_custom_call.1} parent=11 // pred_check_branch
          %316 = sbr.rel (%p314) target = $region40
        $region39: #{tpu_custom_call.1} parent=11 // pred_region
          _
        $region40: #{tpu_custom_call.1} parent=11 // pred_fallthru
          _
        // Predicated region
        $region41: #{tpu_custom_call.1} parent=11 // pred_check
          %p317 = pneg %p253
        $region42: #{tpu_custom_call.1} parent=11 // pred_check_branch
          %319 = sbr.rel (%p317) target = $region44
        $region43: #{tpu_custom_call.1} parent=11 // pred_region
          _
        $region44: #{tpu_custom_call.1} parent=11 // pred_fallthru
          _
      $region12: #{tpu_custom_call.1} parent=5 // pred_fallthru
        _
      %p320 = scmp.lt.s32.totalorder %s19, 2
      // Predicated region
      $region45: #{tpu_custom_call.1} parent=5 // pred_check
        %p321 = pneg %p320
      $region46: #{tpu_custom_call.1} parent=5 // pred_check_branch
        %323 = sbr.rel (%p321) target = $region48
      $region47: #{tpu_custom_call.1} parent=5 // pred_region
        // Predicated region
        $region49: #{tpu_custom_call.1} parent=47 // pred_check
          %p324 = pneg %p53
        $region50: #{tpu_custom_call.1} parent=47 // pred_check_branch
          %326 = sbr.rel (%p324) target = $region52
        $region51: #{tpu_custom_call.1} parent=47 // pred_region
          %s327 = smul.u32 2, %s27
          %p328 = scmp.lt.s32.totalorder %s26, 1
          %s329 = scalar_select %p328, %s26, 1
          %p330 = scmp.lt.s32.totalorder %s327, 1
          %s331 = scalar_select %p330, %s327, 1
          %s332 = smul.addr %s329, 2
          %s333 = sadd.s32 %s331, %s332
          %s334 = smul.addr %s333, 8
          %s335 = scalar_lea.vmem %s0, %s334
          %s336 = smul.u32 2, %s27
        $region52: #{tpu_custom_call.1} parent=47 // pred_fallthru
          _
        // Predicated region
        $region53: #{tpu_custom_call.1} parent=47 // pred_check
          %p337 = pneg %p79
        $region54: #{tpu_custom_call.1} parent=47 // pred_check_branch
          %339 = sbr.rel (%p337) target = $region56
        $region55: #{tpu_custom_call.1} parent=47 // pred_region
          %p340 = scmp.lt.s32.totalorder %s26, 1
          %s341 = scalar_select %p340, %s26, 1
          %s342 = smul.addr %s341, 4
          %s343 = smul.addr %s342, 8
          %s344 = scalar_lea.vmem %s1, %s343
        $region56: #{tpu_custom_call.1} parent=47 // pred_fallthru
          _
      $region48: #{tpu_custom_call.1} parent=5 // pred_fallthru
        _
      %p345 = scmp.le.s32.totalorder 1, %s19
      %p346 = scmp.lt.s32.totalorder %s19, 3
      %p347 = pnand %p345, %p346
      %p348 = pneg %p347
      // Predicated region
      $region57: #{tpu_custom_call.1} parent=5 // pred_check
        _
      $region58: #{tpu_custom_call.1} parent=5 // pred_check_branch
        %350 = sbr.rel (%p347) target = $region60
      $region59: #{tpu_custom_call.1} parent=5 // pred_region
        %s351 = ssub.s32 %s19, 1
        %s352 = smul.u32 2, %s29
        %p353 = scmp.lt.s32.totalorder %s28, 1
        %s354 = scalar_select %p353, %s28, 1
        %p355 = scmp.lt.s32.totalorder %s352, 1
        %s356 = scalar_select %p355, %s352, 1
        %s357 = smul.addr %s354, 2
        %s358 = sadd.s32 %s356, %s357
        %s359 = smul.addr %s358, 8
        %s360 = scalar_lea.vmem %s0, %s359
        %p361 = pneg %p59
        %p362 = pneg %p56
        %p363 = scmp.lt.s32.totalorder %s28, 1
        %s364 = scalar_select %p363, %s28, 1
        %s365 = smul.addr %s364, 4
        %s366 = smul.addr %s365, 8
        %s367 = scalar_lea.vmem %s1, %s366
        %p368 = pneg %p85
        %p369 = pneg %p82
        %p370 = pneg %p106
        %p371 = pneg %p103
        %p372 = pneg %p127
        %p373 = pneg %p124
        %p374 = pneg %p148
        %p375 = pneg %p145
        %p376 = pneg %p169
        %p377 = pneg %p166
        %p378 = pneg %p190
        %p379 = pneg %p187
        %p380 = pneg %p211
        %p381 = pneg %p208
        %p382 = pneg %p232
        %p383 = pneg %p229
        %p384 = pneg %p253
        %p385 = pneg %p250
        %p386 = pneg %p281
        %p387 = pneg %p278
        %s388 = sand.u32 %s268, 1
        %s389 = scalar_lea.sflag [#allocation3], %s388
        %s390 = sand.u32 %s268, 1
        %s391 = smul.addr %s390, 16
        %s392 = scalar_lea.vmem [#allocation2], %s391
        %s393 = smul.u32 2, %s29
        %p394 = scmp.lt.s32.totalorder %s28, 1
        %s395 = scalar_select %p394, %s28, 1
        %p396 = scmp.lt.s32.totalorder %s393, 1
        %s397 = scalar_select %p396, %s393, 1
        %s398 = smul.addr %s395, 2
        %s399 = sadd.s32 %s397, %s398
        %s400 = smul.addr %s399, 8
        %s401 = scalar_lea.vmem %s0, %s400
        %s402 = smul.u32 2, %s29
        %p403 = scmp.lt.s32.totalorder %s28, 1
        %s404 = scalar_select %p403, %s28, 1
        %s405 = smul.addr %s404, 4
        %s406 = smul.addr %s405, 8
        %s407 = scalar_lea.vmem %s1, %s406
        %s408 = smul.u32 2, %s29
        %v410 = vld [vmem:[%s401] sm:$0xff]
        %v411 = vld [vmem:[%s401 + $0x8] sm:$0xff]
        %v412 = vld [vmem:[%s407] sm:$0xff]
        %v413 = vld [vmem:[%s407 + $0x8] sm:$0xff]
        %v414 = vld [vmem:[%s407 + $0x10] sm:$0xff]
        %v415 = vld [vmem:[%s407 + $0x18] sm:$0xff]
        %v418 = vrot.slane %v410, 1
        %v419 = vrot.slane %v410, 2
        %v420 = vrot.slane %v410, 3
        %v421 = vrot.slane %v410, 4
        %v422 = vrot.slane %v410, 5
        %v423 = vrot.slane %v410, 6
        %v424 = vrot.slane %v410, 7
        %v425 = vrot.slane %v411, 1
        %v426 = vrot.slane %v411, 2
        %v427 = vrot.slane %v411, 3
        %v428 = vrot.slane %v411, 4
        %v429 = vrot.slane %v411, 5
        %v430 = vrot.slane %v411, 6
        %v431 = vrot.slane %v411, 7
        %v432 = vperm.slane %v410, 0
        %v433 = vperm.slane %v418, 0
        %v434 = vperm.slane %v419, 0
        %v435 = vperm.slane %v420, 0
        %v436 = vperm.slane %v421, 0
        %v437 = vperm.slane %v422, 0
        %v438 = vperm.slane %v423, 0
        %v439 = vperm.slane %v424, 0
        %v440 = vperm.slane %v411, 0
        %v441 = vperm.slane %v425, 0
        %v442 = vperm.slane %v426, 0
        %v443 = vperm.slane %v427, 0
        %v444 = vperm.slane %v428, 0
        %v445 = vperm.slane %v429, 0
        %v446 = vperm.slane %v430, 0
        %v447 = vperm.slane %v431, 0
        %v464 = vsub.f32 %v412, %v432
        %v465 = vsub.f32 %v413, %v432
        %v466 = vsub.f32 %v414, %v432
        %v467 = vsub.f32 %v415, %v432
        %v468 = vsub.f32 %v412, %v433
        %v469 = vsub.f32 %v413, %v433
        %v470 = vsub.f32 %v414, %v433
        %v471 = vsub.f32 %v415, %v433
        %v472 = vsub.f32 %v412, %v434
        %v473 = vsub.f32 %v413, %v434
        %v474 = vsub.f32 %v414, %v434
        %v475 = vsub.f32 %v415, %v434
        %v476 = vsub.f32 %v412, %v435
        %v477 = vsub.f32 %v413, %v435
        %v478 = vsub.f32 %v414, %v435
        %v479 = vsub.f32 %v415, %v435
        %v480 = vsub.f32 %v412, %v436
        %v481 = vsub.f32 %v413, %v436
        %v482 = vsub.f32 %v414, %v436
        %v483 = vsub.f32 %v415, %v436
        %v484 = vsub.f32 %v412, %v437
        %v485 = vsub.f32 %v413, %v437
        %v486 = vsub.f32 %v414, %v437
        %v487 = vsub.f32 %v415, %v437
        %v488 = vsub.f32 %v412, %v438
        %v489 = vsub.f32 %v413, %v438
        %v490 = vsub.f32 %v414, %v438
        %v491 = vsub.f32 %v415, %v438
        %v492 = vsub.f32 %v412, %v439
        %v493 = vsub.f32 %v413, %v439
        %v494 = vsub.f32 %v414, %v439
        %v495 = vsub.f32 %v415, %v439
        %v496 = vsub.f32 %v412, %v440
        %v497 = vsub.f32 %v413, %v440
        %v498 = vsub.f32 %v414, %v440
        %v499 = vsub.f32 %v415, %v440
        %v500 = vsub.f32 %v412, %v441
        %v501 = vsub.f32 %v413, %v441
        %v502 = vsub.f32 %v414, %v441
        %v503 = vsub.f32 %v415, %v441
        %v504 = vsub.f32 %v412, %v442
        %v505 = vsub.f32 %v413, %v442
        %v506 = vsub.f32 %v414, %v442
        %v507 = vsub.f32 %v415, %v442
        %v508 = vsub.f32 %v412, %v443
        %v509 = vsub.f32 %v413, %v443
        %v510 = vsub.f32 %v414, %v443
        %v511 = vsub.f32 %v415, %v443
        %v512 = vsub.f32 %v412, %v444
        %v513 = vsub.f32 %v413, %v444
        %v514 = vsub.f32 %v414, %v444
        %v515 = vsub.f32 %v415, %v444
        %v516 = vsub.f32 %v412, %v445
        %v517 = vsub.f32 %v413, %v445
        %v518 = vsub.f32 %v414, %v445
        %v519 = vsub.f32 %v415, %v445
        %v520 = vsub.f32 %v412, %v446
        %v521 = vsub.f32 %v413, %v446
        %v522 = vsub.f32 %v414, %v446
        %v523 = vsub.f32 %v415, %v446
        %v524 = vsub.f32 %v412, %v447
        %v525 = vsub.f32 %v413, %v447
        %v526 = vsub.f32 %v414, %v447
        %v527 = vsub.f32 %v415, %v447
        %v528 = vmul.f32 %v464, %v464
        %v529 = vmul.f32 %v465, %v465
        %v530 = vmul.f32 %v466, %v466
        %v531 = vmul.f32 %v467, %v467
        %v532 = vmul.f32 %v468, %v468
        %v533 = vmul.f32 %v469, %v469
        %v534 = vmul.f32 %v470, %v470
        %v535 = vmul.f32 %v471, %v471
        %v536 = vmul.f32 %v472, %v472
        %v537 = vmul.f32 %v473, %v473
        %v538 = vmul.f32 %v474, %v474
        %v539 = vmul.f32 %v475, %v475
        %v540 = vmul.f32 %v476, %v476
        %v541 = vmul.f32 %v477, %v477
        %v542 = vmul.f32 %v478, %v478
        %v543 = vmul.f32 %v479, %v479
        %v544 = vmul.f32 %v480, %v480
        %v545 = vmul.f32 %v481, %v481
        %v546 = vmul.f32 %v482, %v482
        %v547 = vmul.f32 %v483, %v483
        %v548 = vmul.f32 %v484, %v484
        %v549 = vmul.f32 %v485, %v485
        %v550 = vmul.f32 %v486, %v486
        %v551 = vmul.f32 %v487, %v487
        %v552 = vmul.f32 %v488, %v488
        %v553 = vmul.f32 %v489, %v489
        %v554 = vmul.f32 %v490, %v490
        %v555 = vmul.f32 %v491, %v491
        %v556 = vmul.f32 %v492, %v492
        %v557 = vmul.f32 %v493, %v493
        %v558 = vmul.f32 %v494, %v494
        %v559 = vmul.f32 %v495, %v495
        %v560 = vmul.f32 %v496, %v496
        %v561 = vmul.f32 %v497, %v497
        %v562 = vmul.f32 %v498, %v498
        %v563 = vmul.f32 %v499, %v499
        %v564 = vmul.f32 %v500, %v500
        %v565 = vmul.f32 %v501, %v501
        %v566 = vmul.f32 %v502, %v502
        %v567 = vmul.f32 %v503, %v503
        %v568 = vmul.f32 %v504, %v504
        %v569 = vmul.f32 %v505, %v505
        %v570 = vmul.f32 %v506, %v506
        %v571 = vmul.f32 %v507, %v507
        %v572 = vmul.f32 %v508, %v508
        %v573 = vmul.f32 %v509, %v509
        %v574 = vmul.f32 %v510, %v510
        %v575 = vmul.f32 %v511, %v511
        %v576 = vmul.f32 %v512, %v512
        %v577 = vmul.f32 %v513, %v513
        %v578 = vmul.f32 %v514, %v514
        %v579 = vmul.f32 %v515, %v515
        %v580 = vmul.f32 %v516, %v516
        %v581 = vmul.f32 %v517, %v517
        %v582 = vmul.f32 %v518, %v518
        %v583 = vmul.f32 %v519, %v519
        %v584 = vmul.f32 %v520, %v520
        %v585 = vmul.f32 %v521, %v521
        %v586 = vmul.f32 %v522, %v522
        %v587 = vmul.f32 %v523, %v523
        %v588 = vmul.f32 %v524, %v524
        %v589 = vmul.f32 %v525, %v525
        %v590 = vmul.f32 %v526, %v526
        %v591 = vmul.f32 %v527, %v527
        %vm592 = vcmask 23552
        %v593 = vsel %vm592, %v528, 0.0
        %594 = vadd.xlane.f32.xlu0 %v593
        %v595 = vpop.xlane.xlu0 %594
        %v596 = vsel %vm592, %v529, 0.0
        %597 = vadd.xlane.f32.xlu0 %v596
        %v598 = vpop.xlane.xlu0 %597
        %v599 = vsel %vm592, %v530, 0.0
        %600 = vadd.xlane.f32.xlu0 %v599
        %v601 = vpop.xlane.xlu0 %600
        %v602 = vsel %vm592, %v531, 0.0
        %603 = vadd.xlane.f32.xlu0 %v602
        %v604 = vpop.xlane.xlu0 %603
        %v605 = vsel %vm592, %v532, 0.0
        %606 = vadd.xlane.f32.xlu0 %v605
        %v607 = vpop.xlane.xlu0 %606
        %v608 = vsel %vm592, %v533, 0.0
        %609 = vadd.xlane.f32.xlu0 %v608
        %v610 = vpop.xlane.xlu0 %609
        %v611 = vsel %vm592, %v534, 0.0
        %612 = vadd.xlane.f32.xlu0 %v611
        %v613 = vpop.xlane.xlu0 %612
        %v614 = vsel %vm592, %v535, 0.0
        %615 = vadd.xlane.f32.xlu0 %v614
        %v616 = vpop.xlane.xlu0 %615
        %v617 = vsel %vm592, %v536, 0.0
        %618 = vadd.xlane.f32.xlu0 %v617
        %v619 = vpop.xlane.xlu0 %618
        %v620 = vsel %vm592, %v537, 0.0
        %621 = vadd.xlane.f32.xlu0 %v620
        %v622 = vpop.xlane.xlu0 %621
        %v623 = vsel %vm592, %v538, 0.0
        %624 = vadd.xlane.f32.xlu0 %v623
        %v625 = vpop.xlane.xlu0 %624
        %v626 = vsel %vm592, %v539, 0.0
        %627 = vadd.xlane.f32.xlu0 %v626
        %v628 = vpop.xlane.xlu0 %627
        %v629 = vsel %vm592, %v540, 0.0
        %630 = vadd.xlane.f32.xlu0 %v629
        %v631 = vpop.xlane.xlu0 %630
        %v632 = vsel %vm592, %v541, 0.0
        %633 = vadd.xlane.f32.xlu0 %v632
        %v634 = vpop.xlane.xlu0 %633
        %v635 = vsel %vm592, %v542, 0.0
        %636 = vadd.xlane.f32.xlu0 %v635
        %v637 = vpop.xlane.xlu0 %636
        %v638 = vsel %vm592, %v543, 0.0
        %639 = vadd.xlane.f32.xlu0 %v638
        %v640 = vpop.xlane.xlu0 %639
        %v641 = vsel %vm592, %v544, 0.0
        %642 = vadd.xlane.f32.xlu0 %v641
        %v643 = vpop.xlane.xlu0 %642
        %v644 = vsel %vm592, %v545, 0.0
        %645 = vadd.xlane.f32.xlu0 %v644
        %v646 = vpop.xlane.xlu0 %645
        %v647 = vsel %vm592, %v546, 0.0
        %648 = vadd.xlane.f32.xlu0 %v647
        %v649 = vpop.xlane.xlu0 %648
        %v650 = vsel %vm592, %v547, 0.0
        %651 = vadd.xlane.f32.xlu0 %v650
        %v652 = vpop.xlane.xlu0 %651
        %v653 = vsel %vm592, %v548, 0.0
        %654 = vadd.xlane.f32.xlu0 %v653
        %v655 = vpop.xlane.xlu0 %654
        %v656 = vsel %vm592, %v549, 0.0
        %657 = vadd.xlane.f32.xlu0 %v656
        %v658 = vpop.xlane.xlu0 %657
        %v659 = vsel %vm592, %v550, 0.0
        %660 = vadd.xlane.f32.xlu0 %v659
        %v661 = vpop.xlane.xlu0 %660
        %v662 = vsel %vm592, %v551, 0.0
        %663 = vadd.xlane.f32.xlu0 %v662
        %v664 = vpop.xlane.xlu0 %663
        %v665 = vsel %vm592, %v552, 0.0
        %666 = vadd.xlane.f32.xlu0 %v665
        %v667 = vpop.xlane.xlu0 %666
        %v668 = vsel %vm592, %v553, 0.0
        %669 = vadd.xlane.f32.xlu0 %v668
        %v670 = vpop.xlane.xlu0 %669
        %v671 = vsel %vm592, %v554, 0.0
        %672 = vadd.xlane.f32.xlu0 %v671
        %v673 = vpop.xlane.xlu0 %672
        %v674 = vsel %vm592, %v555, 0.0
        %675 = vadd.xlane.f32.xlu0 %v674
        %v676 = vpop.xlane.xlu0 %675
        %v677 = vsel %vm592, %v556, 0.0
        %678 = vadd.xlane.f32.xlu0 %v677
        %v679 = vpop.xlane.xlu0 %678
        %v680 = vsel %vm592, %v557, 0.0
        %681 = vadd.xlane.f32.xlu0 %v680
        %v682 = vpop.xlane.xlu0 %681
        %v683 = vsel %vm592, %v558, 0.0
        %684 = vadd.xlane.f32.xlu0 %v683
        %v685 = vpop.xlane.xlu0 %684
        %v686 = vsel %vm592, %v559, 0.0
        %687 = vadd.xlane.f32.xlu0 %v686
        %v688 = vpop.xlane.xlu0 %687
        %v689 = vsel %vm592, %v560, 0.0
        %690 = vadd.xlane.f32.xlu0 %v689
        %v691 = vpop.xlane.xlu0 %690
        %v692 = vsel %vm592, %v561, 0.0
        %693 = vadd.xlane.f32.xlu0 %v692
        %v694 = vpop.xlane.xlu0 %693
        %v695 = vsel %vm592, %v562, 0.0
        %696 = vadd.xlane.f32.xlu0 %v695
        %v697 = vpop.xlane.xlu0 %696
        %v698 = vsel %vm592, %v563, 0.0
        %699 = vadd.xlane.f32.xlu0 %v698
        %v700 = vpop.xlane.xlu0 %699
        %v701 = vsel %vm592, %v564, 0.0
        %702 = vadd.xlane.f32.xlu0 %v701
        %v703 = vpop.xlane.xlu0 %702
        %v704 = vsel %vm592, %v565, 0.0
        %705 = vadd.xlane.f32.xlu0 %v704
        %v706 = vpop.xlane.xlu0 %705
        %v707 = vsel %vm592, %v566, 0.0
        %708 = vadd.xlane.f32.xlu0 %v707
        %v709 = vpop.xlane.xlu0 %708
        %v710 = vsel %vm592, %v567, 0.0
        %711 = vadd.xlane.f32.xlu0 %v710
        %v712 = vpop.xlane.xlu0 %711
        %v713 = vsel %vm592, %v568, 0.0
        %714 = vadd.xlane.f32.xlu0 %v713
        %v715 = vpop.xlane.xlu0 %714
        %v716 = vsel %vm592, %v569, 0.0
        %717 = vadd.xlane.f32.xlu0 %v716
        %v718 = vpop.xlane.xlu0 %717
        %v719 = vsel %vm592, %v570, 0.0
        %720 = vadd.xlane.f32.xlu0 %v719
        %v721 = vpop.xlane.xlu0 %720
        %v722 = vsel %vm592, %v571, 0.0
        %723 = vadd.xlane.f32.xlu0 %v722
        %v724 = vpop.xlane.xlu0 %723
        %v725 = vsel %vm592, %v572, 0.0
        %726 = vadd.xlane.f32.xlu0 %v725
        %v727 = vpop.xlane.xlu0 %726
        %v728 = vsel %vm592, %v573, 0.0
        %729 = vadd.xlane.f32.xlu0 %v728
        %v730 = vpop.xlane.xlu0 %729
        %v731 = vsel %vm592, %v574, 0.0
        %732 = vadd.xlane.f32.xlu0 %v731
        %v733 = vpop.xlane.xlu0 %732
        %v734 = vsel %vm592, %v575, 0.0
        %735 = vadd.xlane.f32.xlu0 %v734
        %v736 = vpop.xlane.xlu0 %735
        %v737 = vsel %vm592, %v576, 0.0
        %738 = vadd.xlane.f32.xlu0 %v737
        %v739 = vpop.xlane.xlu0 %738
        %v740 = vsel %vm592, %v577, 0.0
        %741 = vadd.xlane.f32.xlu0 %v740
        %v742 = vpop.xlane.xlu0 %741
        %v743 = vsel %vm592, %v578, 0.0
        %744 = vadd.xlane.f32.xlu0 %v743
        %v745 = vpop.xlane.xlu0 %744
        %v746 = vsel %vm592, %v579, 0.0
        %747 = vadd.xlane.f32.xlu0 %v746
        %v748 = vpop.xlane.xlu0 %747
        %v749 = vsel %vm592, %v580, 0.0
        %750 = vadd.xlane.f32.xlu0 %v749
        %v751 = vpop.xlane.xlu0 %750
        %v752 = vsel %vm592, %v581, 0.0
        %753 = vadd.xlane.f32.xlu0 %v752
        %v754 = vpop.xlane.xlu0 %753
        %v755 = vsel %vm592, %v582, 0.0
        %756 = vadd.xlane.f32.xlu0 %v755
        %v757 = vpop.xlane.xlu0 %756
        %v758 = vsel %vm592, %v583, 0.0
        %759 = vadd.xlane.f32.xlu0 %v758
        %v760 = vpop.xlane.xlu0 %759
        %v761 = vsel %vm592, %v584, 0.0
        %762 = vadd.xlane.f32.xlu0 %v761
        %v763 = vpop.xlane.xlu0 %762
        %v764 = vsel %vm592, %v585, 0.0
        %765 = vadd.xlane.f32.xlu0 %v764
        %v766 = vpop.xlane.xlu0 %765
        %v767 = vsel %vm592, %v586, 0.0
        %768 = vadd.xlane.f32.xlu0 %v767
        %v769 = vpop.xlane.xlu0 %768
        %v770 = vsel %vm592, %v587, 0.0
        %771 = vadd.xlane.f32.xlu0 %v770
        %v772 = vpop.xlane.xlu0 %771
        %v773 = vsel %vm592, %v588, 0.0
        %774 = vadd.xlane.f32.xlu0 %v773
        %v775 = vpop.xlane.xlu0 %774
        %v776 = vsel %vm592, %v589, 0.0
        %777 = vadd.xlane.f32.xlu0 %v776
        %v778 = vpop.xlane.xlu0 %777
        %v779 = vsel %vm592, %v590, 0.0
        %780 = vadd.xlane.f32.xlu0 %v779
        %v781 = vpop.xlane.xlu0 %780
        %v782 = vsel %vm592, %v591, 0.0
        %783 = vadd.xlane.f32.xlu0 %v782
        %v784 = vpop.xlane.xlu0 %783
        %v785 = vlaneseq
        %v786 = vand.u32 %v785, 127
        %vm787 = vcmp.le.f32.partialorder %v595, 0.04
        %vm788 = vcmp.le.f32.partialorder %v598, 0.04
        %vm789 = vcmp.le.f32.partialorder %v601, 0.04
        %vm790 = vcmp.le.f32.partialorder %v604, 0.04
        %vm791 = vcmp.le.f32.partialorder %v607, 0.04
        %vm792 = vcmp.le.f32.partialorder %v610, 0.04
        %vm793 = vcmp.le.f32.partialorder %v613, 0.04
        %vm794 = vcmp.le.f32.partialorder %v616, 0.04
        %vm795 = vcmp.le.f32.partialorder %v619, 0.04
        %vm796 = vcmp.le.f32.partialorder %v622, 0.04
        %vm797 = vcmp.le.f32.partialorder %v625, 0.04
        %vm798 = vcmp.le.f32.partialorder %v628, 0.04
        %vm799 = vcmp.le.f32.partialorder %v631, 0.04
        %vm800 = vcmp.le.f32.partialorder %v634, 0.04
        %vm801 = vcmp.le.f32.partialorder %v637, 0.04
        %vm802 = vcmp.le.f32.partialorder %v640, 0.04
        %vm803 = vcmp.le.f32.partialorder %v643, 0.04
        %vm804 = vcmp.le.f32.partialorder %v646, 0.04
        %vm805 = vcmp.le.f32.partialorder %v649, 0.04
        %vm806 = vcmp.le.f32.partialorder %v652, 0.04
        %vm807 = vcmp.le.f32.partialorder %v655, 0.04
        %vm808 = vcmp.le.f32.partialorder %v658, 0.04
        %vm809 = vcmp.le.f32.partialorder %v661, 0.04
        %vm810 = vcmp.le.f32.partialorder %v664, 0.04
        %vm811 = vcmp.le.f32.partialorder %v667, 0.04
        %vm812 = vcmp.le.f32.partialorder %v670, 0.04
        %vm813 = vcmp.le.f32.partialorder %v673, 0.04
        %vm814 = vcmp.le.f32.partialorder %v676, 0.04
        %vm815 = vcmp.le.f32.partialorder %v679, 0.04
        %vm816 = vcmp.le.f32.partialorder %v682, 0.04
        %vm817 = vcmp.le.f32.partialorder %v685, 0.04
        %vm818 = vcmp.le.f32.partialorder %v688, 0.04
        %vm819 = vcmp.le.f32.partialorder %v691, 0.04
        %vm820 = vcmp.le.f32.partialorder %v694, 0.04
        %vm821 = vcmp.le.f32.partialorder %v697, 0.04
        %vm822 = vcmp.le.f32.partialorder %v700, 0.04
        %vm823 = vcmp.le.f32.partialorder %v703, 0.04
        %vm824 = vcmp.le.f32.partialorder %v706, 0.04
        %vm825 = vcmp.le.f32.partialorder %v709, 0.04
        %vm826 = vcmp.le.f32.partialorder %v712, 0.04
        %vm827 = vcmp.le.f32.partialorder %v715, 0.04
        %vm828 = vcmp.le.f32.partialorder %v718, 0.04
        %vm829 = vcmp.le.f32.partialorder %v721, 0.04
        %vm830 = vcmp.le.f32.partialorder %v724, 0.04
        %vm831 = vcmp.le.f32.partialorder %v727, 0.04
        %vm832 = vcmp.le.f32.partialorder %v730, 0.04
        %vm833 = vcmp.le.f32.partialorder %v733, 0.04
        %vm834 = vcmp.le.f32.partialorder %v736, 0.04
        %vm835 = vcmp.le.f32.partialorder %v739, 0.04
        %vm836 = vcmp.le.f32.partialorder %v742, 0.04
        %vm837 = vcmp.le.f32.partialorder %v745, 0.04
        %vm838 = vcmp.le.f32.partialorder %v748, 0.04
        %vm839 = vcmp.le.f32.partialorder %v751, 0.04
        %vm840 = vcmp.le.f32.partialorder %v754, 0.04
        %vm841 = vcmp.le.f32.partialorder %v757, 0.04
        %vm842 = vcmp.le.f32.partialorder %v760, 0.04
        %vm843 = vcmp.le.f32.partialorder %v763, 0.04
        %vm844 = vcmp.le.f32.partialorder %v766, 0.04
        %vm845 = vcmp.le.f32.partialorder %v769, 0.04
        %vm846 = vcmp.le.f32.partialorder %v772, 0.04
        %vm847 = vcmp.le.f32.partialorder %v775, 0.04
        %vm848 = vcmp.le.f32.partialorder %v778, 0.04
        %vm849 = vcmp.le.f32.partialorder %v781, 0.04
        %vm850 = vcmp.le.f32.partialorder %v784, 0.04
        %vm851 = vcmp.lt.s32.totalorder %v786, 32
        %v852 = vsel %vm851, 1, 0
        %v853 = vlaneseq
        %v854 = vshrl.u32 %v853, 7
        %856 = vset.pattern.permute.xlu0 %v854
        %857 = vperm.xlu0 %856, %v852
        %v858 = vpop.permute.xlu0 %857
        %v859 = vlaneseq
        %v860 = vshrl.u32 %v859, 7
        %v861 = vadd.s32 %v860, 8
        %862 = vset.pattern.permute.xlu0 %v861
        %863 = vperm.xlu0 %862, %v852
        %v864 = vpop.permute.xlu0 %863
        %v865 = vlaneseq
        %v866 = vshrl.u32 %v865, 7
        %v867 = vadd.s32 %v866, 16
        %868 = vset.pattern.permute.xlu0 %v867
        %869 = vperm.xlu0 %868, %v852
        %v870 = vpop.permute.xlu0 %869
        %v871 = vlaneseq
        %v872 = vshrl.u32 %v871, 7
        %v873 = vadd.s32 %v872, 24
        %874 = vset.pattern.permute.xlu0 %v873
        %875 = vperm.xlu0 %874, %v852
        %v876 = vpop.permute.xlu0 %875
        %vm877 = vcmp.ne.s32.totalorder %v858, 0
        %vm878 = vcmp.ne.s32.totalorder %v864, 0
        %vm879 = vcmp.ne.s32.totalorder %v870, 0
        %vm880 = vcmp.ne.s32.totalorder %v876, 0
        %vm881 = vmand %vm787, %vm877
        %vm882 = vmand %vm788, %vm878
        %vm883 = vmand %vm789, %vm879
        %vm884 = vmand %vm790, %vm880
        %vm885 = vmand %vm791, %vm877
        %vm886 = vmand %vm792, %vm878
        %vm887 = vmand %vm793, %vm879
        %vm888 = vmand %vm794, %vm880
        %vm889 = vmand %vm795, %vm877
        %vm890 = vmand %vm796, %vm878
        %vm891 = vmand %vm797, %vm879
        %vm892 = vmand %vm798, %vm880
        %vm893 = vmand %vm799, %vm877
        %vm894 = vmand %vm800, %vm878
        %vm895 = vmand %vm801, %vm879
        %vm896 = vmand %vm802, %vm880
        %vm897 = vmand %vm803, %vm877
        %vm898 = vmand %vm804, %vm878
        %vm899 = vmand %vm805, %vm879
        %vm900 = vmand %vm806, %vm880
        %vm901 = vmand %vm807, %vm877
        %vm902 = vmand %vm808, %vm878
        %vm903 = vmand %vm809, %vm879
        %vm904 = vmand %vm810, %vm880
        %vm905 = vmand %vm811, %vm877
        %vm906 = vmand %vm812, %vm878
        %vm907 = vmand %vm813, %vm879
        %vm908 = vmand %vm814, %vm880
        %vm909 = vmand %vm815, %vm877
        %vm910 = vmand %vm816, %vm878
        %vm911 = vmand %vm817, %vm879
        %vm912 = vmand %vm818, %vm880
        %vm913 = vmand %vm819, %vm877
        %vm914 = vmand %vm820, %vm878
        %vm915 = vmand %vm821, %vm879
        %vm916 = vmand %vm822, %vm880
        %vm917 = vmand %vm823, %vm877
        %vm918 = vmand %vm824, %vm878
        %vm919 = vmand %vm825, %vm879
        %vm920 = vmand %vm826, %vm880
        %vm921 = vmand %vm827, %vm877
        %vm922 = vmand %vm828, %vm878
        %vm923 = vmand %vm829, %vm879
        %vm924 = vmand %vm830, %vm880
        %vm925 = vmand %vm831, %vm877
        %vm926 = vmand %vm832, %vm878
        %vm927 = vmand %vm833, %vm879
        %vm928 = vmand %vm834, %vm880
        %vm929 = vmand %vm835, %vm877
        %vm930 = vmand %vm836, %vm878
        %vm931 = vmand %vm837, %vm879
        %vm932 = vmand %vm838, %vm880
        %vm933 = vmand %vm839, %vm877
        %vm934 = vmand %vm840, %vm878
        %vm935 = vmand %vm841, %vm879
        %vm936 = vmand %vm842, %vm880
        %vm937 = vmand %vm843, %vm877
        %vm938 = vmand %vm844, %vm878
        %vm939 = vmand %vm845, %vm879
        %vm940 = vmand %vm846, %vm880
        %vm941 = vmand %vm847, %vm877
        %vm942 = vmand %vm848, %vm878
        %vm943 = vmand %vm849, %vm879
        %vm944 = vmand %vm850, %vm880
        %v945 = vsel %vm881, 0.0, -1e+30
        %v946 = vsel %vm882, 0.0, -1e+30
        %v947 = vsel %vm883, 0.0, -1e+30
        %v948 = vsel %vm884, 0.0, -1e+30
        %v949 = vsel %vm885, 0.0, -1e+30
        %v950 = vsel %vm886, 0.0, -1e+30
        %v951 = vsel %vm887, 0.0, -1e+30
        %v952 = vsel %vm888, 0.0, -1e+30
        %v953 = vsel %vm889, 0.0, -1e+30
        %v954 = vsel %vm890, 0.0, -1e+30
        %v955 = vsel %vm891, 0.0, -1e+30
        %v956 = vsel %vm892, 0.0, -1e+30
        %v957 = vsel %vm893, 0.0, -1e+30
        %v958 = vsel %vm894, 0.0, -1e+30
        %v959 = vsel %vm895, 0.0, -1e+30
        %v960 = vsel %vm896, 0.0, -1e+30
        %v961 = vsel %vm897, 0.0, -1e+30
        %v962 = vsel %vm898, 0.0, -1e+30
        %v963 = vsel %vm899, 0.0, -1e+30
        %v964 = vsel %vm900, 0.0, -1e+30
        %v965 = vsel %vm901, 0.0, -1e+30
        %v966 = vsel %vm902, 0.0, -1e+30
        %v967 = vsel %vm903, 0.0, -1e+30
        %v968 = vsel %vm904, 0.0, -1e+30
        %v969 = vsel %vm905, 0.0, -1e+30
        %v970 = vsel %vm906, 0.0, -1e+30
        %v971 = vsel %vm907, 0.0, -1e+30
        %v972 = vsel %vm908, 0.0, -1e+30
        %v973 = vsel %vm909, 0.0, -1e+30
        %v974 = vsel %vm910, 0.0, -1e+30
        %v975 = vsel %vm911, 0.0, -1e+30
        %v976 = vsel %vm912, 0.0, -1e+30
        %v977 = vsel %vm913, 0.0, -1e+30
        %v978 = vsel %vm914, 0.0, -1e+30
        %v979 = vsel %vm915, 0.0, -1e+30
        %v980 = vsel %vm916, 0.0, -1e+30
        %v981 = vsel %vm917, 0.0, -1e+30
        %v982 = vsel %vm918, 0.0, -1e+30
        %v983 = vsel %vm919, 0.0, -1e+30
        %v984 = vsel %vm920, 0.0, -1e+30
        %v985 = vsel %vm921, 0.0, -1e+30
        %v986 = vsel %vm922, 0.0, -1e+30
        %v987 = vsel %vm923, 0.0, -1e+30
        %v988 = vsel %vm924, 0.0, -1e+30
        %v989 = vsel %vm925, 0.0, -1e+30
        %v990 = vsel %vm926, 0.0, -1e+30
        %v991 = vsel %vm927, 0.0, -1e+30
        %v992 = vsel %vm928, 0.0, -1e+30
        %v993 = vsel %vm929, 0.0, -1e+30
        %v994 = vsel %vm930, 0.0, -1e+30
        %v995 = vsel %vm931, 0.0, -1e+30
        %v996 = vsel %vm932, 0.0, -1e+30
        %v997 = vsel %vm933, 0.0, -1e+30
        %v998 = vsel %vm934, 0.0, -1e+30
        %v999 = vsel %vm935, 0.0, -1e+30
        %v1000 = vsel %vm936, 0.0, -1e+30
        %v1001 = vsel %vm937, 0.0, -1e+30
        %v1002 = vsel %vm938, 0.0, -1e+30
        %v1003 = vsel %vm939, 0.0, -1e+30
        %v1004 = vsel %vm940, 0.0, -1e+30
        %v1005 = vsel %vm941, 0.0, -1e+30
        %v1006 = vsel %vm942, 0.0, -1e+30
        %v1007 = vsel %vm943, 0.0, -1e+30
        %v1008 = vsel %vm944, 0.0, -1e+30
        %v1009 = vld [vmem:[%s2] sm:$0x7]
        %v1011 = vsel %vm592, %v464, 0
        %v1014 = vsel %vm592, %v465, 0
        %v1017 = vsel %vm592, %v466, 0
        %v1020 = vsel %vm592, %v467, 0
        %v1023 = vsel %vm592, %v468, 0
        %v1026 = vsel %vm592, %v469, 0
        %v1029 = vsel %vm592, %v470, 0
        %v1032 = vsel %vm592, %v471, 0
        %v1035 = vsel %vm592, %v472, 0
        %v1038 = vsel %vm592, %v473, 0
        %v1041 = vsel %vm592, %v474, 0
        %v1044 = vsel %vm592, %v475, 0
        %v1047 = vsel %vm592, %v476, 0
        %v1050 = vsel %vm592, %v477, 0
        %v1053 = vsel %vm592, %v478, 0
        %v1056 = vsel %vm592, %v479, 0
        %v1059 = vsel %vm592, %v480, 0
        %v1062 = vsel %vm592, %v481, 0
        %v1065 = vsel %vm592, %v482, 0
        %v1068 = vsel %vm592, %v483, 0
        %v1071 = vsel %vm592, %v484, 0
        %v1074 = vsel %vm592, %v485, 0
        %v1077 = vsel %vm592, %v486, 0
        %v1080 = vsel %vm592, %v487, 0
        %v1083 = vsel %vm592, %v488, 0
        %v1086 = vsel %vm592, %v489, 0
        %v1089 = vsel %vm592, %v490, 0
        %v1092 = vsel %vm592, %v491, 0
        %v1095 = vsel %vm592, %v492, 0
        %v1098 = vsel %vm592, %v493, 0
        %v1101 = vsel %vm592, %v494, 0
        %v1104 = vsel %vm592, %v495, 0
        %v1107 = vsel %vm592, %v496, 0
        %v1110 = vsel %vm592, %v497, 0
        %v1113 = vsel %vm592, %v498, 0
        %v1116 = vsel %vm592, %v499, 0
        %v1119 = vsel %vm592, %v500, 0
        %v1122 = vsel %vm592, %v501, 0
        %v1125 = vsel %vm592, %v502, 0
        %v1128 = vsel %vm592, %v503, 0
        %v1131 = vsel %vm592, %v504, 0
        %v1134 = vsel %vm592, %v505, 0
        %v1137 = vsel %vm592, %v506, 0
        %v1140 = vsel %vm592, %v507, 0
        %v1143 = vsel %vm592, %v508, 0
        %v1146 = vsel %vm592, %v509, 0
        %v1149 = vsel %vm592, %v510, 0
        %v1152 = vsel %vm592, %v511, 0
        %v1155 = vsel %vm592, %v512, 0
        %v1158 = vsel %vm592, %v513, 0
        %v1161 = vsel %vm592, %v514, 0
        %v1164 = vsel %vm592, %v515, 0
        %v1167 = vsel %vm592, %v516, 0
        %v1170 = vsel %vm592, %v517, 0
        %v1173 = vsel %vm592, %v518, 0
        %v1176 = vsel %vm592, %v519, 0
        %v1179 = vsel %vm592, %v520, 0
        %v1182 = vsel %vm592, %v521, 0
        %v1185 = vsel %vm592, %v522, 0
        %v1188 = vsel %vm592, %v523, 0
        %v1191 = vsel %vm592, %v524, 0
        %v1194 = vsel %vm592, %v525, 0
        %v1197 = vsel %vm592, %v526, 0
        %v1200 = vsel %vm592, %v527, 0
        %vm1202 = vcmask 1042432
        %v1204 = vsel %vm1202, %v1009, 0
        %1206 = vmatpush.msra.mxu0 0.0
        %1207 = vmatpush.msra.mxu0 0.0
        %1208 = vmatpush.msra.mxu0 0.0
        %1209 = vmatpush.msra.mxu0 0.0
        %1210 = vmatpush.msra.mxu0 0.0
        %1211 = vmatpush.msra.mxu0 0.0
        %1212 = vmatpush.msra.mxu0 0.0
        %1213 = vmatpush.msra.mxu0 0.0
        %1214 = vmatpush.msra.mxu0 0.0
        %1215 = vmatpush.msra.mxu0 0.0
        %1216 = vmatpush.msra.mxu0 0.0
        %1217 = vmatpush.msra.mxu0 0.0
        %1218 = vmatpush.msra.mxu0 0.0
        %1219 = vmatpush.msra.mxu0 0.0
        %1220 = vmatpush.msra.mxu0 0.0
        %1221 = vmatpush.msra.mxu0 %v1204
        %1222 = vmatmul.f32.gmra.mxu0 %v1011
        %v1223 = vpop.f32.mrf.mxu0
        %v1224 = vadd.f32 0.0, %v1223
        %1225 = vmatmul.f32.gmra.mxu0 %v1014
        %v1226 = vpop.f32.mrf.mxu0
        %v1227 = vadd.f32 0.0, %v1226
        %1228 = vmatmul.f32.gmra.mxu0 %v1017
        %v1229 = vpop.f32.mrf.mxu0
        %v1230 = vadd.f32 0.0, %v1229
        %1231 = vmatmul.f32.gmra.mxu0 %v1020
        %v1232 = vpop.f32.mrf.mxu0
        %v1233 = vadd.f32 0.0, %v1232
        %1234 = vmatmul.f32.gmra.mxu0 %v1023
        %v1235 = vpop.f32.mrf.mxu0
        %v1236 = vadd.f32 0.0, %v1235
        %1237 = vmatmul.f32.gmra.mxu0 %v1026
        %v1238 = vpop.f32.mrf.mxu0
        %v1239 = vadd.f32 0.0, %v1238
        %1240 = vmatmul.f32.gmra.mxu0 %v1029
        %v1241 = vpop.f32.mrf.mxu0
        %v1242 = vadd.f32 0.0, %v1241
        %1243 = vmatmul.f32.gmra.mxu0 %v1032
        %v1244 = vpop.f32.mrf.mxu0
        %v1245 = vadd.f32 0.0, %v1244
        %1246 = vmatmul.f32.gmra.mxu0 %v1035
        %v1247 = vpop.f32.mrf.mxu0
        %v1248 = vadd.f32 0.0, %v1247
        %1249 = vmatmul.f32.gmra.mxu0 %v1038
        %v1250 = vpop.f32.mrf.mxu0
        %v1251 = vadd.f32 0.0, %v1250
        %1252 = vmatmul.f32.gmra.mxu0 %v1041
        %v1253 = vpop.f32.mrf.mxu0
        %v1254 = vadd.f32 0.0, %v1253
        %1255 = vmatmul.f32.gmra.mxu0 %v1044
        %v1256 = vpop.f32.mrf.mxu0
        %v1257 = vadd.f32 0.0, %v1256
        %1258 = vmatmul.f32.gmra.mxu0 %v1047
        %v1259 = vpop.f32.mrf.mxu0
        %v1260 = vadd.f32 0.0, %v1259
        %1261 = vmatmul.f32.gmra.mxu0 %v1050
        %v1262 = vpop.f32.mrf.mxu0
        %v1263 = vadd.f32 0.0, %v1262
        %1264 = vmatmul.f32.gmra.mxu0 %v1053
        %v1265 = vpop.f32.mrf.mxu0
        %v1266 = vadd.f32 0.0, %v1265
        %1267 = vmatmul.f32.gmra.mxu0 %v1056
        %v1268 = vpop.f32.mrf.mxu0
        %v1269 = vadd.f32 0.0, %v1268
        %1270 = vmatmul.f32.gmra.mxu0 %v1059
        %v1271 = vpop.f32.mrf.mxu0
        %v1272 = vadd.f32 0.0, %v1271
        %1273 = vmatmul.f32.gmra.mxu0 %v1062
        %v1274 = vpop.f32.mrf.mxu0
        %v1275 = vadd.f32 0.0, %v1274
        %1276 = vmatmul.f32.gmra.mxu0 %v1065
        %v1277 = vpop.f32.mrf.mxu0
        %v1278 = vadd.f32 0.0, %v1277
        %1279 = vmatmul.f32.gmra.mxu0 %v1068
        %v1280 = vpop.f32.mrf.mxu0
        %v1281 = vadd.f32 0.0, %v1280
        %1282 = vmatmul.f32.gmra.mxu0 %v1071
        %v1283 = vpop.f32.mrf.mxu0
        %v1284 = vadd.f32 0.0, %v1283
        %1285 = vmatmul.f32.gmra.mxu0 %v1074
        %v1286 = vpop.f32.mrf.mxu0
        %v1287 = vadd.f32 0.0, %v1286
        %1288 = vmatmul.f32.gmra.mxu0 %v1077
        %v1289 = vpop.f32.mrf.mxu0
        %v1290 = vadd.f32 0.0, %v1289
        %1291 = vmatmul.f32.gmra.mxu0 %v1080
        %v1292 = vpop.f32.mrf.mxu0
        %v1293 = vadd.f32 0.0, %v1292
        %1294 = vmatmul.f32.gmra.mxu0 %v1083
        %v1295 = vpop.f32.mrf.mxu0
        %v1296 = vadd.f32 0.0, %v1295
        %1297 = vmatmul.f32.gmra.mxu0 %v1086
        %v1298 = vpop.f32.mrf.mxu0
        %v1299 = vadd.f32 0.0, %v1298
        %1300 = vmatmul.f32.gmra.mxu0 %v1089
        %v1301 = vpop.f32.mrf.mxu0
        %v1302 = vadd.f32 0.0, %v1301
        %1303 = vmatmul.f32.gmra.mxu0 %v1092
        %v1304 = vpop.f32.mrf.mxu0
        %v1305 = vadd.f32 0.0, %v1304
        %1306 = vmatmul.f32.gmra.mxu0 %v1095
        %v1307 = vpop.f32.mrf.mxu0
        %v1308 = vadd.f32 0.0, %v1307
        %1309 = vmatmul.f32.gmra.mxu0 %v1098
        %v1310 = vpop.f32.mrf.mxu0
        %v1311 = vadd.f32 0.0, %v1310
        %1312 = vmatmul.f32.gmra.mxu0 %v1101
        %v1313 = vpop.f32.mrf.mxu0
        %v1314 = vadd.f32 0.0, %v1313
        %1315 = vmatmul.f32.gmra.mxu0 %v1104
        %v1316 = vpop.f32.mrf.mxu0
        %v1317 = vadd.f32 0.0, %v1316
        %1318 = vmatmul.f32.gmra.mxu0 %v1107
        %v1319 = vpop.f32.mrf.mxu0
        %v1320 = vadd.f32 0.0, %v1319
        %1321 = vmatmul.f32.gmra.mxu0 %v1110
        %v1322 = vpop.f32.mrf.mxu0
        %v1323 = vadd.f32 0.0, %v1322
        %1324 = vmatmul.f32.gmra.mxu0 %v1113
        %v1325 = vpop.f32.mrf.mxu0
        %v1326 = vadd.f32 0.0, %v1325
        %1327 = vmatmul.f32.gmra.mxu0 %v1116
        %v1328 = vpop.f32.mrf.mxu0
        %v1329 = vadd.f32 0.0, %v1328
        %1330 = vmatmul.f32.gmra.mxu0 %v1119
        %v1331 = vpop.f32.mrf.mxu0
        %v1332 = vadd.f32 0.0, %v1331
        %1333 = vmatmul.f32.gmra.mxu0 %v1122
        %v1334 = vpop.f32.mrf.mxu0
        %v1335 = vadd.f32 0.0, %v1334
        %1336 = vmatmul.f32.gmra.mxu0 %v1125
        %v1337 = vpop.f32.mrf.mxu0
        %v1338 = vadd.f32 0.0, %v1337
        %1339 = vmatmul.f32.gmra.mxu0 %v1128
        %v1340 = vpop.f32.mrf.mxu0
        %v1341 = vadd.f32 0.0, %v1340
        %1342 = vmatmul.f32.gmra.mxu0 %v1131
        %v1343 = vpop.f32.mrf.mxu0
        %v1344 = vadd.f32 0.0, %v1343
        %1345 = vmatmul.f32.gmra.mxu0 %v1134
        %v1346 = vpop.f32.mrf.mxu0
        %v1347 = vadd.f32 0.0, %v1346
        %1348 = vmatmul.f32.gmra.mxu0 %v1137
        %v1349 = vpop.f32.mrf.mxu0
        %v1350 = vadd.f32 0.0, %v1349
        %1351 = vmatmul.f32.gmra.mxu0 %v1140
        %v1352 = vpop.f32.mrf.mxu0
        %v1353 = vadd.f32 0.0, %v1352
        %1354 = vmatmul.f32.gmra.mxu0 %v1143
        %v1355 = vpop.f32.mrf.mxu0
        %v1356 = vadd.f32 0.0, %v1355
        %1357 = vmatmul.f32.gmra.mxu0 %v1146
        %v1358 = vpop.f32.mrf.mxu0
        %v1359 = vadd.f32 0.0, %v1358
        %1360 = vmatmul.f32.gmra.mxu0 %v1149
        %v1361 = vpop.f32.mrf.mxu0
        %v1362 = vadd.f32 0.0, %v1361
        %1363 = vmatmul.f32.gmra.mxu0 %v1152
        %v1364 = vpop.f32.mrf.mxu0
        %v1365 = vadd.f32 0.0, %v1364
        %1366 = vmatmul.f32.gmra.mxu0 %v1155
        %v1367 = vpop.f32.mrf.mxu0
        %v1368 = vadd.f32 0.0, %v1367
        %1369 = vmatmul.f32.gmra.mxu0 %v1158
        %v1370 = vpop.f32.mrf.mxu0
        %v1371 = vadd.f32 0.0, %v1370
        %1372 = vmatmul.f32.gmra.mxu0 %v1161
        %v1373 = vpop.f32.mrf.mxu0
        %v1374 = vadd.f32 0.0, %v1373
        %1375 = vmatmul.f32.gmra.mxu0 %v1164
        %v1376 = vpop.f32.mrf.mxu0
        %v1377 = vadd.f32 0.0, %v1376
        %1378 = vmatmul.f32.gmra.mxu0 %v1167
        %v1379 = vpop.f32.mrf.mxu0
        %v1380 = vadd.f32 0.0, %v1379
        %1381 = vmatmul.f32.gmra.mxu0 %v1170
        %v1382 = vpop.f32.mrf.mxu0
        %v1383 = vadd.f32 0.0, %v1382
        %1384 = vmatmul.f32.gmra.mxu0 %v1173
        %v1385 = vpop.f32.mrf.mxu0
        %v1386 = vadd.f32 0.0, %v1385
        %1387 = vmatmul.f32.gmra.mxu0 %v1176
        %v1388 = vpop.f32.mrf.mxu0
        %v1389 = vadd.f32 0.0, %v1388
        %1390 = vmatmul.f32.gmra.mxu0 %v1179
        %v1391 = vpop.f32.mrf.mxu0
        %v1392 = vadd.f32 0.0, %v1391
        %1393 = vmatmul.f32.gmra.mxu0 %v1182
        %v1394 = vpop.f32.mrf.mxu0
        %v1395 = vadd.f32 0.0, %v1394
        %1396 = vmatmul.f32.gmra.mxu0 %v1185
        %v1397 = vpop.f32.mrf.mxu0
        %v1398 = vadd.f32 0.0, %v1397
        %1399 = vmatmul.f32.gmra.mxu0 %v1188
        %v1400 = vpop.f32.mrf.mxu0
        %v1401 = vadd.f32 0.0, %v1400
        %1402 = vmatmul.f32.gmra.mxu0 %v1191
        %v1403 = vpop.f32.mrf.mxu0
        %v1404 = vadd.f32 0.0, %v1403
        %1405 = vmatmul.f32.gmra.mxu0 %v1194
        %v1406 = vpop.f32.mrf.mxu0
        %v1407 = vadd.f32 0.0, %v1406
        %1408 = vmatmul.f32.gmra.mxu0 %v1197
        %v1409 = vpop.f32.mrf.mxu0
        %v1410 = vadd.f32 0.0, %v1409
        %1411 = vmatmul.f32.gmra.mxu0 %v1200
        %v1412 = vpop.f32.mrf.mxu0
        %v1413 = vadd.f32 0.0, %v1412
        %1414 = vdwg.mxu0
        %v1415 = vld [vmem:[%s3] sm:$0x1]
        %v1417 = vperm.slane %v1415, 0
        %v1419 = vadd.f32 %v1224, %v1417
        %v1420 = vadd.f32 %v1227, %v1417
        %v1421 = vadd.f32 %v1230, %v1417
        %v1422 = vadd.f32 %v1233, %v1417
        %v1423 = vadd.f32 %v1236, %v1417
        %v1424 = vadd.f32 %v1239, %v1417
        %v1425 = vadd.f32 %v1242, %v1417
        %v1426 = vadd.f32 %v1245, %v1417
        %v1427 = vadd.f32 %v1248, %v1417
        %v1428 = vadd.f32 %v1251, %v1417
        %v1429 = vadd.f32 %v1254, %v1417
        %v1430 = vadd.f32 %v1257, %v1417
        %v1431 = vadd.f32 %v1260, %v1417
        %v1432 = vadd.f32 %v1263, %v1417
        %v1433 = vadd.f32 %v1266, %v1417
        %v1434 = vadd.f32 %v1269, %v1417
        %v1435 = vadd.f32 %v1272, %v1417
        %v1436 = vadd.f32 %v1275, %v1417
        %v1437 = vadd.f32 %v1278, %v1417
        %v1438 = vadd.f32 %v1281, %v1417
        %v1439 = vadd.f32 %v1284, %v1417
        %v1440 = vadd.f32 %v1287, %v1417
        %v1441 = vadd.f32 %v1290, %v1417
        %v1442 = vadd.f32 %v1293, %v1417
        %v1443 = vadd.f32 %v1296, %v1417
        %v1444 = vadd.f32 %v1299, %v1417
        %v1445 = vadd.f32 %v1302, %v1417
        %v1446 = vadd.f32 %v1305, %v1417
        %v1447 = vadd.f32 %v1308, %v1417
        %v1448 = vadd.f32 %v1311, %v1417
        %v1449 = vadd.f32 %v1314, %v1417
        %v1450 = vadd.f32 %v1317, %v1417
        %v1451 = vadd.f32 %v1320, %v1417
        %v1452 = vadd.f32 %v1323, %v1417
        %v1453 = vadd.f32 %v1326, %v1417
        %v1454 = vadd.f32 %v1329, %v1417
        %v1455 = vadd.f32 %v1332, %v1417
        %v1456 = vadd.f32 %v1335, %v1417
        %v1457 = vadd.f32 %v1338, %v1417
        %v1458 = vadd.f32 %v1341, %v1417
        %v1459 = vadd.f32 %v1344, %v1417
        %v1460 = vadd.f32 %v1347, %v1417
        %v1461 = vadd.f32 %v1350, %v1417
        %v1462 = vadd.f32 %v1353, %v1417
        %v1463 = vadd.f32 %v1356, %v1417
        %v1464 = vadd.f32 %v1359, %v1417
        %v1465 = vadd.f32 %v1362, %v1417
        %v1466 = vadd.f32 %v1365, %v1417
        %v1467 = vadd.f32 %v1368, %v1417
        %v1468 = vadd.f32 %v1371, %v1417
        %v1469 = vadd.f32 %v1374, %v1417
        %v1470 = vadd.f32 %v1377, %v1417
        %v1471 = vadd.f32 %v1380, %v1417
        %v1472 = vadd.f32 %v1383, %v1417
        %v1473 = vadd.f32 %v1386, %v1417
        %v1474 = vadd.f32 %v1389, %v1417
        %v1475 = vadd.f32 %v1392, %v1417
        %v1476 = vadd.f32 %v1395, %v1417
        %v1477 = vadd.f32 %v1398, %v1417
        %v1478 = vadd.f32 %v1401, %v1417
        %v1479 = vadd.f32 %v1404, %v1417
        %v1480 = vadd.f32 %v1407, %v1417
        %v1481 = vadd.f32 %v1410, %v1417
        %v1482 = vadd.f32 %v1413, %v1417
        %v1483 = vmax.f32 %v1419, 0.0
        %v1484 = vmax.f32 %v1420, 0.0
        %v1485 = vmax.f32 %v1421, 0.0
        %v1486 = vmax.f32 %v1422, 0.0
        %v1487 = vmax.f32 %v1423, 0.0
        %v1488 = vmax.f32 %v1424, 0.0
        %v1489 = vmax.f32 %v1425, 0.0
        %v1490 = vmax.f32 %v1426, 0.0
        %v1491 = vmax.f32 %v1427, 0.0
        %v1492 = vmax.f32 %v1428, 0.0
        %v1493 = vmax.f32 %v1429, 0.0
        %v1494 = vmax.f32 %v1430, 0.0
        %v1495 = vmax.f32 %v1431, 0.0
        %v1496 = vmax.f32 %v1432, 0.0
        %v1497 = vmax.f32 %v1433, 0.0
        %v1498 = vmax.f32 %v1434, 0.0
        %v1499 = vmax.f32 %v1435, 0.0
        %v1500 = vmax.f32 %v1436, 0.0
        %v1501 = vmax.f32 %v1437, 0.0
        %v1502 = vmax.f32 %v1438, 0.0
        %v1503 = vmax.f32 %v1439, 0.0
        %v1504 = vmax.f32 %v1440, 0.0
        %v1505 = vmax.f32 %v1441, 0.0
        %v1506 = vmax.f32 %v1442, 0.0
        %v1507 = vmax.f32 %v1443, 0.0
        %v1508 = vmax.f32 %v1444, 0.0
        %v1509 = vmax.f32 %v1445, 0.0
        %v1510 = vmax.f32 %v1446, 0.0
        %v1511 = vmax.f32 %v1447, 0.0
        %v1512 = vmax.f32 %v1448, 0.0
        %v1513 = vmax.f32 %v1449, 0.0
        %v1514 = vmax.f32 %v1450, 0.0
        %v1515 = vmax.f32 %v1451, 0.0
        %v1516 = vmax.f32 %v1452, 0.0
        %v1517 = vmax.f32 %v1453, 0.0
        %v1518 = vmax.f32 %v1454, 0.0
        %v1519 = vmax.f32 %v1455, 0.0
        %v1520 = vmax.f32 %v1456, 0.0
        %v1521 = vmax.f32 %v1457, 0.0
        %v1522 = vmax.f32 %v1458, 0.0
        %v1523 = vmax.f32 %v1459, 0.0
        %v1524 = vmax.f32 %v1460, 0.0
        %v1525 = vmax.f32 %v1461, 0.0
        %v1526 = vmax.f32 %v1462, 0.0
        %v1527 = vmax.f32 %v1463, 0.0
        %v1528 = vmax.f32 %v1464, 0.0
        %v1529 = vmax.f32 %v1465, 0.0
        %v1530 = vmax.f32 %v1466, 0.0
        %v1531 = vmax.f32 %v1467, 0.0
        %v1532 = vmax.f32 %v1468, 0.0
        %v1533 = vmax.f32 %v1469, 0.0
        %v1534 = vmax.f32 %v1470, 0.0
        %v1535 = vmax.f32 %v1471, 0.0
        %v1536 = vmax.f32 %v1472, 0.0
        %v1537 = vmax.f32 %v1473, 0.0
        %v1538 = vmax.f32 %v1474, 0.0
        %v1539 = vmax.f32 %v1475, 0.0
        %v1540 = vmax.f32 %v1476, 0.0
        %v1541 = vmax.f32 %v1477, 0.0
        %v1542 = vmax.f32 %v1478, 0.0
        %v1543 = vmax.f32 %v1479, 0.0
        %v1544 = vmax.f32 %v1480, 0.0
        %v1545 = vmax.f32 %v1481, 0.0
        %v1546 = vmax.f32 %v1482, 0.0
        %v1547 = vpack.c.bf16 %v1484, %v1483
        %v1548 = vpack.c.bf16 %v1486, %v1485
        %v1549 = vpack.c.bf16 %v1488, %v1487
        %v1550 = vpack.c.bf16 %v1490, %v1489
        %v1551 = vpack.c.bf16 %v1492, %v1491
        %v1552 = vpack.c.bf16 %v1494, %v1493
        %v1553 = vpack.c.bf16 %v1496, %v1495
        %v1554 = vpack.c.bf16 %v1498, %v1497
        %v1555 = vpack.c.bf16 %v1500, %v1499
        %v1556 = vpack.c.bf16 %v1502, %v1501
        %v1557 = vpack.c.bf16 %v1504, %v1503
        %v1558 = vpack.c.bf16 %v1506, %v1505
        %v1559 = vpack.c.bf16 %v1508, %v1507
        %v1560 = vpack.c.bf16 %v1510, %v1509
        %v1561 = vpack.c.bf16 %v1512, %v1511
        %v1562 = vpack.c.bf16 %v1514, %v1513
        %v1563 = vpack.c.bf16 %v1516, %v1515
        %v1564 = vpack.c.bf16 %v1518, %v1517
        %v1565 = vpack.c.bf16 %v1520, %v1519
        %v1566 = vpack.c.bf16 %v1522, %v1521
        %v1567 = vpack.c.bf16 %v1524, %v1523
        %v1568 = vpack.c.bf16 %v1526, %v1525
        %v1569 = vpack.c.bf16 %v1528, %v1527
        %v1570 = vpack.c.bf16 %v1530, %v1529
        %v1571 = vpack.c.bf16 %v1532, %v1531
        %v1572 = vpack.c.bf16 %v1534, %v1533
        %v1573 = vpack.c.bf16 %v1536, %v1535
        %v1574 = vpack.c.bf16 %v1538, %v1537
        %v1575 = vpack.c.bf16 %v1540, %v1539
        %v1576 = vpack.c.bf16 %v1542, %v1541
        %v1577 = vpack.c.bf16 %v1544, %v1543
        %v1578 = vpack.c.bf16 %v1546, %v1545
        %v1579 = vld [vmem:[%s4] sm:$0xf]
        %v1580 = vld [vmem:[%s4 + $0x4] sm:$0xf]
        %v1581 = vld [vmem:[%s4 + $0x8] sm:$0xf]
        %v1582 = vld [vmem:[%s4 + $0xc] sm:$0xf]
        %v1583 = vld [vmem:[%s4 + $0x10] sm:$0xf]
        %v1584 = vld [vmem:[%s4 + $0x14] sm:$0xf]
        %v1585 = vld [vmem:[%s4 + $0x18] sm:$0xf]
        %v1586 = vld [vmem:[%s4 + $0x1c] sm:$0xf]
        %v1587 = vld [vmem:[%s5] sm:$0x1]
        %v1589 = vperm.slane %v1587, 0
        %v1599 = vunpack.c.l.b16 %v1579
        %v1600 = vunpack.c.l.b16 %v1580
        %v1601 = vunpack.c.l.b16 %v1581
        %v1602 = vunpack.c.l.b16 %v1582
        %v1603 = vunpack.c.l.b16 %v1583
        %v1604 = vunpack.c.l.b16 %v1584
        %v1605 = vunpack.c.l.b16 %v1585
        %v1606 = vunpack.c.l.b16 %v1586
        %v1607 = vpack.c.b16 %v1600, %v1599
        %v1608 = vpack.c.b16 %v1602, %v1601
        %v1609 = vpack.c.b16 %v1604, %v1603
        %v1610 = vpack.c.b16 %v1606, %v1605
        %vm1615 = vcmask 523264
        %v1617 = vsel %vm1615, %v1547, 0
        %v1620 = vsel %vm1615, %v1548, 0
        %v1623 = vsel %vm1615, %v1549, 0
        %v1626 = vsel %vm1615, %v1550, 0
        %v1629 = vsel %vm1615, %v1551, 0
        %v1632 = vsel %vm1615, %v1552, 0
        %v1635 = vsel %vm1615, %v1553, 0
        %v1638 = vsel %vm1615, %v1554, 0
        %v1641 = vsel %vm1615, %v1555, 0
        %v1644 = vsel %vm1615, %v1556, 0
        %v1647 = vsel %vm1615, %v1557, 0
        %v1650 = vsel %vm1615, %v1558, 0
        %v1653 = vsel %vm1615, %v1559, 0
        %v1656 = vsel %vm1615, %v1560, 0
        %v1659 = vsel %vm1615, %v1561, 0
        %v1662 = vsel %vm1615, %v1562, 0
        %v1665 = vsel %vm1615, %v1563, 0
        %v1668 = vsel %vm1615, %v1564, 0
        %v1671 = vsel %vm1615, %v1565, 0
        %v1674 = vsel %vm1615, %v1566, 0
        %v1677 = vsel %vm1615, %v1567, 0
        %v1680 = vsel %vm1615, %v1568, 0
        %v1683 = vsel %vm1615, %v1569, 0
        %v1686 = vsel %vm1615, %v1570, 0
        %v1689 = vsel %vm1615, %v1571, 0
        %v1692 = vsel %vm1615, %v1572, 0
        %v1695 = vsel %vm1615, %v1573, 0
        %v1698 = vsel %vm1615, %v1574, 0
        %v1701 = vsel %vm1615, %v1575, 0
        %v1704 = vsel %vm1615, %v1576, 0
        %v1707 = vsel %vm1615, %v1577, 0
        %v1710 = vsel %vm1615, %v1578, 0
        %1712 = vmatpush.bf16.msra.mxu0 0
        %1713 = vmatpush.bf16.msra.mxu0 0
        %1714 = vmatpush.bf16.msra.mxu0 0
        %1715 = vmatpush.bf16.msra.mxu0 0
        %1716 = vmatpush.bf16.msra.mxu0 %v1610
        %1717 = vmatpush.bf16.msra.mxu0 %v1609
        %1718 = vmatpush.bf16.msra.mxu0 %v1608
        %1719 = vmatpush.bf16.msra.mxu0 %v1607
        %1720 = vmatmul.bf16.gmra.mxu0 %v1617
        %v1721 = vpop.f32.mrf.mxu0
        %v1722 = vadd.f32 %v1589, %v1721
        %v1723 = vpop.f32.mrf.mxu0
        %v1724 = vadd.f32 %v1589, %v1723
        %1725 = vmatmul.bf16.gmra.mxu0 %v1620
        %v1726 = vpop.f32.mrf.mxu0
        %v1727 = vadd.f32 %v1589, %v1726
        %v1728 = vpop.f32.mrf.mxu0
        %v1729 = vadd.f32 %v1589, %v1728
        %1730 = vmatmul.bf16.gmra.mxu0 %v1623
        %v1731 = vpop.f32.mrf.mxu0
        %v1732 = vadd.f32 %v1589, %v1731
        %v1733 = vpop.f32.mrf.mxu0
        %v1734 = vadd.f32 %v1589, %v1733
        %1735 = vmatmul.bf16.gmra.mxu0 %v1626
        %v1736 = vpop.f32.mrf.mxu0
        %v1737 = vadd.f32 %v1589, %v1736
        %v1738 = vpop.f32.mrf.mxu0
        %v1739 = vadd.f32 %v1589, %v1738
        %1740 = vmatmul.bf16.gmra.mxu0 %v1629
        %v1741 = vpop.f32.mrf.mxu0
        %v1742 = vadd.f32 %v1589, %v1741
        %v1743 = vpop.f32.mrf.mxu0
        %v1744 = vadd.f32 %v1589, %v1743
        %1745 = vmatmul.bf16.gmra.mxu0 %v1632
        %v1746 = vpop.f32.mrf.mxu0
        %v1747 = vadd.f32 %v1589, %v1746
        %v1748 = vpop.f32.mrf.mxu0
        %v1749 = vadd.f32 %v1589, %v1748
        %1750 = vmatmul.bf16.gmra.mxu0 %v1635
        %v1751 = vpop.f32.mrf.mxu0
        %v1752 = vadd.f32 %v1589, %v1751
        %v1753 = vpop.f32.mrf.mxu0
        %v1754 = vadd.f32 %v1589, %v1753
        %1755 = vmatmul.bf16.gmra.mxu0 %v1638
        %v1756 = vpop.f32.mrf.mxu0
        %v1757 = vadd.f32 %v1589, %v1756
        %v1758 = vpop.f32.mrf.mxu0
        %v1759 = vadd.f32 %v1589, %v1758
        %1760 = vmatmul.bf16.gmra.mxu0 %v1641
        %v1761 = vpop.f32.mrf.mxu0
        %v1762 = vadd.f32 %v1589, %v1761
        %v1763 = vpop.f32.mrf.mxu0
        %v1764 = vadd.f32 %v1589, %v1763
        %1765 = vmatmul.bf16.gmra.mxu0 %v1644
        %v1766 = vpop.f32.mrf.mxu0
        %v1767 = vadd.f32 %v1589, %v1766
        %v1768 = vpop.f32.mrf.mxu0
        %v1769 = vadd.f32 %v1589, %v1768
        %1770 = vmatmul.bf16.gmra.mxu0 %v1647
        %v1771 = vpop.f32.mrf.mxu0
        %v1772 = vadd.f32 %v1589, %v1771
        %v1773 = vpop.f32.mrf.mxu0
        %v1774 = vadd.f32 %v1589, %v1773
        %1775 = vmatmul.bf16.gmra.mxu0 %v1650
        %v1776 = vpop.f32.mrf.mxu0
        %v1777 = vadd.f32 %v1589, %v1776
        %v1778 = vpop.f32.mrf.mxu0
        %v1779 = vadd.f32 %v1589, %v1778
        %1780 = vmatmul.bf16.gmra.mxu0 %v1653
        %v1781 = vpop.f32.mrf.mxu0
        %v1782 = vadd.f32 %v1589, %v1781
        %v1783 = vpop.f32.mrf.mxu0
        %v1784 = vadd.f32 %v1589, %v1783
        %1785 = vmatmul.bf16.gmra.mxu0 %v1656
        %v1786 = vpop.f32.mrf.mxu0
        %v1787 = vadd.f32 %v1589, %v1786
        %v1788 = vpop.f32.mrf.mxu0
        %v1789 = vadd.f32 %v1589, %v1788
        %1790 = vmatmul.bf16.gmra.mxu0 %v1659
        %v1791 = vpop.f32.mrf.mxu0
        %v1792 = vadd.f32 %v1589, %v1791
        %v1793 = vpop.f32.mrf.mxu0
        %v1794 = vadd.f32 %v1589, %v1793
        %1795 = vmatmul.bf16.gmra.mxu0 %v1662
        %v1796 = vpop.f32.mrf.mxu0
        %v1797 = vadd.f32 %v1589, %v1796
        %v1798 = vpop.f32.mrf.mxu0
        %v1799 = vadd.f32 %v1589, %v1798
        %1800 = vmatmul.bf16.gmra.mxu0 %v1665
        %v1801 = vpop.f32.mrf.mxu0
        %v1802 = vadd.f32 %v1589, %v1801
        %v1803 = vpop.f32.mrf.mxu0
        %v1804 = vadd.f32 %v1589, %v1803
        %1805 = vmatmul.bf16.gmra.mxu0 %v1668
        %v1806 = vpop.f32.mrf.mxu0
        %v1807 = vadd.f32 %v1589, %v1806
        %v1808 = vpop.f32.mrf.mxu0
        %v1809 = vadd.f32 %v1589, %v1808
        %1810 = vmatmul.bf16.gmra.mxu0 %v1671
        %v1811 = vpop.f32.mrf.mxu0
        %v1812 = vadd.f32 %v1589, %v1811
        %v1813 = vpop.f32.mrf.mxu0
        %v1814 = vadd.f32 %v1589, %v1813
        %1815 = vmatmul.bf16.gmra.mxu0 %v1674
        %v1816 = vpop.f32.mrf.mxu0
        %v1817 = vadd.f32 %v1589, %v1816
        %v1818 = vpop.f32.mrf.mxu0
        %v1819 = vadd.f32 %v1589, %v1818
        %1820 = vmatmul.bf16.gmra.mxu0 %v1677
        %v1821 = vpop.f32.mrf.mxu0
        %v1822 = vadd.f32 %v1589, %v1821
        %v1823 = vpop.f32.mrf.mxu0
        %v1824 = vadd.f32 %v1589, %v1823
        %1825 = vmatmul.bf16.gmra.mxu0 %v1680
        %v1826 = vpop.f32.mrf.mxu0
        %v1827 = vadd.f32 %v1589, %v1826
        %v1828 = vpop.f32.mrf.mxu0
        %v1829 = vadd.f32 %v1589, %v1828
        %1830 = vmatmul.bf16.gmra.mxu0 %v1683
        %v1831 = vpop.f32.mrf.mxu0
        %v1832 = vadd.f32 %v1589, %v1831
        %v1833 = vpop.f32.mrf.mxu0
        %v1834 = vadd.f32 %v1589, %v1833
        %1835 = vmatmul.bf16.gmra.mxu0 %v1686
        %v1836 = vpop.f32.mrf.mxu0
        %v1837 = vadd.f32 %v1589, %v1836
        %v1838 = vpop.f32.mrf.mxu0
        %v1839 = vadd.f32 %v1589, %v1838
        %1840 = vmatmul.bf16.gmra.mxu0 %v1689
        %v1841 = vpop.f32.mrf.mxu0
        %v1842 = vadd.f32 %v1589, %v1841
        %v1843 = vpop.f32.mrf.mxu0
        %v1844 = vadd.f32 %v1589, %v1843
        %1845 = vmatmul.bf16.gmra.mxu0 %v1692
        %v1846 = vpop.f32.mrf.mxu0
        %v1847 = vadd.f32 %v1589, %v1846
        %v1848 = vpop.f32.mrf.mxu0
        %v1849 = vadd.f32 %v1589, %v1848
        %1850 = vmatmul.bf16.gmra.mxu0 %v1695
        %v1851 = vpop.f32.mrf.mxu0
        %v1852 = vadd.f32 %v1589, %v1851
        %v1853 = vpop.f32.mrf.mxu0
        %v1854 = vadd.f32 %v1589, %v1853
        %1855 = vmatmul.bf16.gmra.mxu0 %v1698
        %v1856 = vpop.f32.mrf.mxu0
        %v1857 = vadd.f32 %v1589, %v1856
        %v1858 = vpop.f32.mrf.mxu0
        %v1859 = vadd.f32 %v1589, %v1858
        %1860 = vmatmul.bf16.gmra.mxu0 %v1701
        %v1861 = vpop.f32.mrf.mxu0
        %v1862 = vadd.f32 %v1589, %v1861
        %v1863 = vpop.f32.mrf.mxu0
        %v1864 = vadd.f32 %v1589, %v1863
        %1865 = vmatmul.bf16.gmra.mxu0 %v1704
        %v1866 = vpop.f32.mrf.mxu0
        %v1867 = vadd.f32 %v1589, %v1866
        %v1868 = vpop.f32.mrf.mxu0
        %v1869 = vadd.f32 %v1589, %v1868
        %1870 = vmatmul.bf16.gmra.mxu0 %v1707
        %v1871 = vpop.f32.mrf.mxu0
        %v1872 = vadd.f32 %v1589, %v1871
        %v1873 = vpop.f32.mrf.mxu0
        %v1874 = vadd.f32 %v1589, %v1873
        %1875 = vmatmul.bf16.gmra.mxu0 %v1710
        %v1876 = vpop.f32.mrf.mxu0
        %v1877 = vadd.f32 %v1589, %v1876
        %v1878 = vpop.f32.mrf.mxu0
        %v1879 = vadd.f32 %v1589, %v1878
        %1880 = vdwg.mxu0
        %v1881 = vmax.f32 %v1722, 0.0
        %v1882 = vmax.f32 %v1724, 0.0
        %v1883 = vmax.f32 %v1727, 0.0
        %v1884 = vmax.f32 %v1729, 0.0
        %v1885 = vmax.f32 %v1732, 0.0
        %v1886 = vmax.f32 %v1734, 0.0
        %v1887 = vmax.f32 %v1737, 0.0
        %v1888 = vmax.f32 %v1739, 0.0
        %v1889 = vmax.f32 %v1742, 0.0
        %v1890 = vmax.f32 %v1744, 0.0
        %v1891 = vmax.f32 %v1747, 0.0
        %v1892 = vmax.f32 %v1749, 0.0
        %v1893 = vmax.f32 %v1752, 0.0
        %v1894 = vmax.f32 %v1754, 0.0
        %v1895 = vmax.f32 %v1757, 0.0
        %v1896 = vmax.f32 %v1759, 0.0
        %v1897 = vmax.f32 %v1762, 0.0
        %v1898 = vmax.f32 %v1764, 0.0
        %v1899 = vmax.f32 %v1767, 0.0
        %v1900 = vmax.f32 %v1769, 0.0
        %v1901 = vmax.f32 %v1772, 0.0
        %v1902 = vmax.f32 %v1774, 0.0
        %v1903 = vmax.f32 %v1777, 0.0
        %v1904 = vmax.f32 %v1779, 0.0
        %v1905 = vmax.f32 %v1782, 0.0
        %v1906 = vmax.f32 %v1784, 0.0
        %v1907 = vmax.f32 %v1787, 0.0
        %v1908 = vmax.f32 %v1789, 0.0
        %v1909 = vmax.f32 %v1792, 0.0
        %v1910 = vmax.f32 %v1794, 0.0
        %v1911 = vmax.f32 %v1797, 0.0
        %v1912 = vmax.f32 %v1799, 0.0
        %v1913 = vmax.f32 %v1802, 0.0
        %v1914 = vmax.f32 %v1804, 0.0
        %v1915 = vmax.f32 %v1807, 0.0
        %v1916 = vmax.f32 %v1809, 0.0
        %v1917 = vmax.f32 %v1812, 0.0
        %v1918 = vmax.f32 %v1814, 0.0
        %v1919 = vmax.f32 %v1817, 0.0
        %v1920 = vmax.f32 %v1819, 0.0
        %v1921 = vmax.f32 %v1822, 0.0
        %v1922 = vmax.f32 %v1824, 0.0
        %v1923 = vmax.f32 %v1827, 0.0
        %v1924 = vmax.f32 %v1829, 0.0
        %v1925 = vmax.f32 %v1832, 0.0
        %v1926 = vmax.f32 %v1834, 0.0
        %v1927 = vmax.f32 %v1837, 0.0
        %v1928 = vmax.f32 %v1839, 0.0
        %v1929 = vmax.f32 %v1842, 0.0
        %v1930 = vmax.f32 %v1844, 0.0
        %v1931 = vmax.f32 %v1847, 0.0
        %v1932 = vmax.f32 %v1849, 0.0
        %v1933 = vmax.f32 %v1852, 0.0
        %v1934 = vmax.f32 %v1854, 0.0
        %v1935 = vmax.f32 %v1857, 0.0
        %v1936 = vmax.f32 %v1859, 0.0
        %v1937 = vmax.f32 %v1862, 0.0
        %v1938 = vmax.f32 %v1864, 0.0
        %v1939 = vmax.f32 %v1867, 0.0
        %v1940 = vmax.f32 %v1869, 0.0
        %v1941 = vmax.f32 %v1872, 0.0
        %v1942 = vmax.f32 %v1874, 0.0
        %v1943 = vmax.f32 %v1877, 0.0
        %v1944 = vmax.f32 %v1879, 0.0
        %v1945 = vpack.c.bf16 %v1882, %v1881
        %v1946 = vpack.c.bf16 %v1884, %v1883
        %v1947 = vpack.c.bf16 %v1886, %v1885
        %v1948 = vpack.c.bf16 %v1888, %v1887
        %v1949 = vpack.c.bf16 %v1890, %v1889
        %v1950 = vpack.c.bf16 %v1892, %v1891
        %v1951 = vpack.c.bf16 %v1894, %v1893
        %v1952 = vpack.c.bf16 %v1896, %v1895
        %v1953 = vpack.c.bf16 %v1898, %v1897
        %v1954 = vpack.c.bf16 %v1900, %v1899
        %v1955 = vpack.c.bf16 %v1902, %v1901
        %v1956 = vpack.c.bf16 %v1904, %v1903
        %v1957 = vpack.c.bf16 %v1906, %v1905
        %v1958 = vpack.c.bf16 %v1908, %v1907
        %v1959 = vpack.c.bf16 %v1910, %v1909
        %v1960 = vpack.c.bf16 %v1912, %v1911
        %v1961 = vpack.c.bf16 %v1914, %v1913
        %v1962 = vpack.c.bf16 %v1916, %v1915
        %v1963 = vpack.c.bf16 %v1918, %v1917
        %v1964 = vpack.c.bf16 %v1920, %v1919
        %v1965 = vpack.c.bf16 %v1922, %v1921
        %v1966 = vpack.c.bf16 %v1924, %v1923
        %v1967 = vpack.c.bf16 %v1926, %v1925
        %v1968 = vpack.c.bf16 %v1928, %v1927
        %v1969 = vpack.c.bf16 %v1930, %v1929
        %v1970 = vpack.c.bf16 %v1932, %v1931
        %v1971 = vpack.c.bf16 %v1934, %v1933
        %v1972 = vpack.c.bf16 %v1936, %v1935
        %v1973 = vpack.c.bf16 %v1938, %v1937
        %v1974 = vpack.c.bf16 %v1940, %v1939
        %v1975 = vpack.c.bf16 %v1942, %v1941
        %v1976 = vpack.c.bf16 %v1944, %v1943
        %v1977 = vld [vmem:[%s6] sm:$0xf]
        %v1978 = vld [vmem:[%s6 + $0x4] sm:$0xf]
        %v1979 = vld [vmem:[%s6 + $0x8] sm:$0xf]
        %v1980 = vld [vmem:[%s6 + $0xc] sm:$0xf]
        %v1981 = vld [vmem:[%s6 + $0x10] sm:$0xf]
        %v1982 = vld [vmem:[%s6 + $0x14] sm:$0xf]
        %v1983 = vld [vmem:[%s6 + $0x18] sm:$0xf]
        %v1984 = vld [vmem:[%s6 + $0x1c] sm:$0xf]
        %v1985 = vld [vmem:[%s7] sm:$0x1]
        %v1987 = vperm.slane %v1985, 0
        %v1997 = vunpack.c.l.b16 %v1977
        %v1998 = vunpack.c.l.b16 %v1978
        %v1999 = vunpack.c.l.b16 %v1979
        %v2000 = vunpack.c.l.b16 %v1980
        %v2001 = vunpack.c.l.b16 %v1981
        %v2002 = vunpack.c.l.b16 %v1982
        %v2003 = vunpack.c.l.b16 %v1983
        %v2004 = vunpack.c.l.b16 %v1984
        %v2005 = vpack.c.b16 %v1998, %v1997
        %v2006 = vpack.c.b16 %v2000, %v1999
        %v2007 = vpack.c.b16 %v2002, %v2001
        %v2008 = vpack.c.b16 %v2004, %v2003
        %v2014 = vsel %vm1615, %v1945, 0
        %v2017 = vsel %vm1615, %v1946, 0
        %v2020 = vsel %vm1615, %v1947, 0
        %v2023 = vsel %vm1615, %v1948, 0
        %v2026 = vsel %vm1615, %v1949, 0
        %v2029 = vsel %vm1615, %v1950, 0
        %v2032 = vsel %vm1615, %v1951, 0
        %v2035 = vsel %vm1615, %v1952, 0
        %v2038 = vsel %vm1615, %v1953, 0
        %v2041 = vsel %vm1615, %v1954, 0
        %v2044 = vsel %vm1615, %v1955, 0
        %v2047 = vsel %vm1615, %v1956, 0
        %v2050 = vsel %vm1615, %v1957, 0
        %v2053 = vsel %vm1615, %v1958, 0
        %v2056 = vsel %vm1615, %v1959, 0
        %v2059 = vsel %vm1615, %v1960, 0
        %v2062 = vsel %vm1615, %v1961, 0
        %v2065 = vsel %vm1615, %v1962, 0
        %v2068 = vsel %vm1615, %v1963, 0
        %v2071 = vsel %vm1615, %v1964, 0
        %v2074 = vsel %vm1615, %v1965, 0
        %v2077 = vsel %vm1615, %v1966, 0
        %v2080 = vsel %vm1615, %v1967, 0
        %v2083 = vsel %vm1615, %v1968, 0
        %v2086 = vsel %vm1615, %v1969, 0
        %v2089 = vsel %vm1615, %v1970, 0
        %v2092 = vsel %vm1615, %v1971, 0
        %v2095 = vsel %vm1615, %v1972, 0
        %v2098 = vsel %vm1615, %v1973, 0
        %v2101 = vsel %vm1615, %v1974, 0
        %v2104 = vsel %vm1615, %v1975, 0
        %v2107 = vsel %vm1615, %v1976, 0
        %2109 = vmatpush.bf16.msra.mxu0 0
        %2110 = vmatpush.bf16.msra.mxu0 0
        %2111 = vmatpush.bf16.msra.mxu0 0
        %2112 = vmatpush.bf16.msra.mxu0 0
        %2113 = vmatpush.bf16.msra.mxu0 %v2008
        %2114 = vmatpush.bf16.msra.mxu0 %v2007
        %2115 = vmatpush.bf16.msra.mxu0 %v2006
        %2116 = vmatpush.bf16.msra.mxu0 %v2005
        %2117 = vmatmul.bf16.gmra.mxu0 %v2014
        %v2118 = vpop.f32.mrf.mxu0
        %v2119 = vadd.f32 %v1987, %v2118
        %v2120 = vpop.f32.mrf.mxu0
        %v2121 = vadd.f32 %v1987, %v2120
        %2122 = vmatmul.bf16.gmra.mxu0 %v2017
        %v2123 = vpop.f32.mrf.mxu0
        %v2124 = vadd.f32 %v1987, %v2123
        %v2125 = vpop.f32.mrf.mxu0
        %v2126 = vadd.f32 %v1987, %v2125
        %2127 = vmatmul.bf16.gmra.mxu0 %v2020
        %v2128 = vpop.f32.mrf.mxu0
        %v2129 = vadd.f32 %v1987, %v2128
        %v2130 = vpop.f32.mrf.mxu0
        %v2131 = vadd.f32 %v1987, %v2130
        %2132 = vmatmul.bf16.gmra.mxu0 %v2023
        %v2133 = vpop.f32.mrf.mxu0
        %v2134 = vadd.f32 %v1987, %v2133
        %v2135 = vpop.f32.mrf.mxu0
        %v2136 = vadd.f32 %v1987, %v2135
        %2137 = vmatmul.bf16.gmra.mxu0 %v2026
        %v2138 = vpop.f32.mrf.mxu0
        %v2139 = vadd.f32 %v1987, %v2138
        %v2140 = vpop.f32.mrf.mxu0
        %v2141 = vadd.f32 %v1987, %v2140
        %2142 = vmatmul.bf16.gmra.mxu0 %v2029
        %v2143 = vpop.f32.mrf.mxu0
        %v2144 = vadd.f32 %v1987, %v2143
        %v2145 = vpop.f32.mrf.mxu0
        %v2146 = vadd.f32 %v1987, %v2145
        %2147 = vmatmul.bf16.gmra.mxu0 %v2032
        %v2148 = vpop.f32.mrf.mxu0
        %v2149 = vadd.f32 %v1987, %v2148
        %v2150 = vpop.f32.mrf.mxu0
        %v2151 = vadd.f32 %v1987, %v2150
        %2152 = vmatmul.bf16.gmra.mxu0 %v2035
        %v2153 = vpop.f32.mrf.mxu0
        %v2154 = vadd.f32 %v1987, %v2153
        %v2155 = vpop.f32.mrf.mxu0
        %v2156 = vadd.f32 %v1987, %v2155
        %2157 = vmatmul.bf16.gmra.mxu0 %v2038
        %v2158 = vpop.f32.mrf.mxu0
        %v2159 = vadd.f32 %v1987, %v2158
        %v2160 = vpop.f32.mrf.mxu0
        %v2161 = vadd.f32 %v1987, %v2160
        %2162 = vmatmul.bf16.gmra.mxu0 %v2041
        %v2163 = vpop.f32.mrf.mxu0
        %v2164 = vadd.f32 %v1987, %v2163
        %v2165 = vpop.f32.mrf.mxu0
        %v2166 = vadd.f32 %v1987, %v2165
        %2167 = vmatmul.bf16.gmra.mxu0 %v2044
        %v2168 = vpop.f32.mrf.mxu0
        %v2169 = vadd.f32 %v1987, %v2168
        %v2170 = vpop.f32.mrf.mxu0
        %v2171 = vadd.f32 %v1987, %v2170
        %2172 = vmatmul.bf16.gmra.mxu0 %v2047
        %v2173 = vpop.f32.mrf.mxu0
        %v2174 = vadd.f32 %v1987, %v2173
        %v2175 = vpop.f32.mrf.mxu0
        %v2176 = vadd.f32 %v1987, %v2175
        %2177 = vmatmul.bf16.gmra.mxu0 %v2050
        %v2178 = vpop.f32.mrf.mxu0
        %v2179 = vadd.f32 %v1987, %v2178
        %v2180 = vpop.f32.mrf.mxu0
        %v2181 = vadd.f32 %v1987, %v2180
        %2182 = vmatmul.bf16.gmra.mxu0 %v2053
        %v2183 = vpop.f32.mrf.mxu0
        %v2184 = vadd.f32 %v1987, %v2183
        %v2185 = vpop.f32.mrf.mxu0
        %v2186 = vadd.f32 %v1987, %v2185
        %2187 = vmatmul.bf16.gmra.mxu0 %v2056
        %v2188 = vpop.f32.mrf.mxu0
        %v2189 = vadd.f32 %v1987, %v2188
        %v2190 = vpop.f32.mrf.mxu0
        %v2191 = vadd.f32 %v1987, %v2190
        %2192 = vmatmul.bf16.gmra.mxu0 %v2059
        %v2193 = vpop.f32.mrf.mxu0
        %v2194 = vadd.f32 %v1987, %v2193
        %v2195 = vpop.f32.mrf.mxu0
        %v2196 = vadd.f32 %v1987, %v2195
        %2197 = vmatmul.bf16.gmra.mxu0 %v2062
        %v2198 = vpop.f32.mrf.mxu0
        %v2199 = vadd.f32 %v1987, %v2198
        %v2200 = vpop.f32.mrf.mxu0
        %v2201 = vadd.f32 %v1987, %v2200
        %2202 = vmatmul.bf16.gmra.mxu0 %v2065
        %v2203 = vpop.f32.mrf.mxu0
        %v2204 = vadd.f32 %v1987, %v2203
        %v2205 = vpop.f32.mrf.mxu0
        %v2206 = vadd.f32 %v1987, %v2205
        %2207 = vmatmul.bf16.gmra.mxu0 %v2068
        %v2208 = vpop.f32.mrf.mxu0
        %v2209 = vadd.f32 %v1987, %v2208
        %v2210 = vpop.f32.mrf.mxu0
        %v2211 = vadd.f32 %v1987, %v2210
        %2212 = vmatmul.bf16.gmra.mxu0 %v2071
        %v2213 = vpop.f32.mrf.mxu0
        %v2214 = vadd.f32 %v1987, %v2213
        %v2215 = vpop.f32.mrf.mxu0
        %v2216 = vadd.f32 %v1987, %v2215
        %2217 = vmatmul.bf16.gmra.mxu0 %v2074
        %v2218 = vpop.f32.mrf.mxu0
        %v2219 = vadd.f32 %v1987, %v2218
        %v2220 = vpop.f32.mrf.mxu0
        %v2221 = vadd.f32 %v1987, %v2220
        %2222 = vmatmul.bf16.gmra.mxu0 %v2077
        %v2223 = vpop.f32.mrf.mxu0
        %v2224 = vadd.f32 %v1987, %v2223
        %v2225 = vpop.f32.mrf.mxu0
        %v2226 = vadd.f32 %v1987, %v2225
        %2227 = vmatmul.bf16.gmra.mxu0 %v2080
        %v2228 = vpop.f32.mrf.mxu0
        %v2229 = vadd.f32 %v1987, %v2228
        %v2230 = vpop.f32.mrf.mxu0
        %v2231 = vadd.f32 %v1987, %v2230
        %2232 = vmatmul.bf16.gmra.mxu0 %v2083
        %v2233 = vpop.f32.mrf.mxu0
        %v2234 = vadd.f32 %v1987, %v2233
        %v2235 = vpop.f32.mrf.mxu0
        %v2236 = vadd.f32 %v1987, %v2235
        %2237 = vmatmul.bf16.gmra.mxu0 %v2086
        %v2238 = vpop.f32.mrf.mxu0
        %v2239 = vadd.f32 %v1987, %v2238
        %v2240 = vpop.f32.mrf.mxu0
        %v2241 = vadd.f32 %v1987, %v2240
        %2242 = vmatmul.bf16.gmra.mxu0 %v2089
        %v2243 = vpop.f32.mrf.mxu0
        %v2244 = vadd.f32 %v1987, %v2243
        %v2245 = vpop.f32.mrf.mxu0
        %v2246 = vadd.f32 %v1987, %v2245
        %2247 = vmatmul.bf16.gmra.mxu0 %v2092
        %v2248 = vpop.f32.mrf.mxu0
        %v2249 = vadd.f32 %v1987, %v2248
        %v2250 = vpop.f32.mrf.mxu0
        %v2251 = vadd.f32 %v1987, %v2250
        %2252 = vmatmul.bf16.gmra.mxu0 %v2095
        %v2253 = vpop.f32.mrf.mxu0
        %v2254 = vadd.f32 %v1987, %v2253
        %v2255 = vpop.f32.mrf.mxu0
        %v2256 = vadd.f32 %v1987, %v2255
        %2257 = vmatmul.bf16.gmra.mxu0 %v2098
        %v2258 = vpop.f32.mrf.mxu0
        %v2259 = vadd.f32 %v1987, %v2258
        %v2260 = vpop.f32.mrf.mxu0
        %v2261 = vadd.f32 %v1987, %v2260
        %2262 = vmatmul.bf16.gmra.mxu0 %v2101
        %v2263 = vpop.f32.mrf.mxu0
        %v2264 = vadd.f32 %v1987, %v2263
        %v2265 = vpop.f32.mrf.mxu0
        %v2266 = vadd.f32 %v1987, %v2265
        %2267 = vmatmul.bf16.gmra.mxu0 %v2104
        %v2268 = vpop.f32.mrf.mxu0
        %v2269 = vadd.f32 %v1987, %v2268
        %v2270 = vpop.f32.mrf.mxu0
        %v2271 = vadd.f32 %v1987, %v2270
        %2272 = vmatmul.bf16.gmra.mxu0 %v2107
        %v2273 = vpop.f32.mrf.mxu0
        %v2274 = vadd.f32 %v1987, %v2273
        %v2275 = vpop.f32.mrf.mxu0
        %v2276 = vadd.f32 %v1987, %v2275
        %2277 = vdwg.mxu0
        %v2278 = vmax.f32 %v2119, 0.0
        %v2279 = vmax.f32 %v2121, 0.0
        %v2280 = vmax.f32 %v2124, 0.0
        %v2281 = vmax.f32 %v2126, 0.0
        %v2282 = vmax.f32 %v2129, 0.0
        %v2283 = vmax.f32 %v2131, 0.0
        %v2284 = vmax.f32 %v2134, 0.0
        %v2285 = vmax.f32 %v2136, 0.0
        %v2286 = vmax.f32 %v2139, 0.0
        %v2287 = vmax.f32 %v2141, 0.0
        %v2288 = vmax.f32 %v2144, 0.0
        %v2289 = vmax.f32 %v2146, 0.0
        %v2290 = vmax.f32 %v2149, 0.0
        %v2291 = vmax.f32 %v2151, 0.0
        %v2292 = vmax.f32 %v2154, 0.0
        %v2293 = vmax.f32 %v2156, 0.0
        %v2294 = vmax.f32 %v2159, 0.0
        %v2295 = vmax.f32 %v2161, 0.0
        %v2296 = vmax.f32 %v2164, 0.0
        %v2297 = vmax.f32 %v2166, 0.0
        %v2298 = vmax.f32 %v2169, 0.0
        %v2299 = vmax.f32 %v2171, 0.0
        %v2300 = vmax.f32 %v2174, 0.0
        %v2301 = vmax.f32 %v2176, 0.0
        %v2302 = vmax.f32 %v2179, 0.0
        %v2303 = vmax.f32 %v2181, 0.0
        %v2304 = vmax.f32 %v2184, 0.0
        %v2305 = vmax.f32 %v2186, 0.0
        %v2306 = vmax.f32 %v2189, 0.0
        %v2307 = vmax.f32 %v2191, 0.0
        %v2308 = vmax.f32 %v2194, 0.0
        %v2309 = vmax.f32 %v2196, 0.0
        %v2310 = vmax.f32 %v2199, 0.0
        %v2311 = vmax.f32 %v2201, 0.0
        %v2312 = vmax.f32 %v2204, 0.0
        %v2313 = vmax.f32 %v2206, 0.0
        %v2314 = vmax.f32 %v2209, 0.0
        %v2315 = vmax.f32 %v2211, 0.0
        %v2316 = vmax.f32 %v2214, 0.0
        %v2317 = vmax.f32 %v2216, 0.0
        %v2318 = vmax.f32 %v2219, 0.0
        %v2319 = vmax.f32 %v2221, 0.0
        %v2320 = vmax.f32 %v2224, 0.0
        %v2321 = vmax.f32 %v2226, 0.0
        %v2322 = vmax.f32 %v2229, 0.0
        %v2323 = vmax.f32 %v2231, 0.0
        %v2324 = vmax.f32 %v2234, 0.0
        %v2325 = vmax.f32 %v2236, 0.0
        %v2326 = vmax.f32 %v2239, 0.0
        %v2327 = vmax.f32 %v2241, 0.0
        %v2328 = vmax.f32 %v2244, 0.0
        %v2329 = vmax.f32 %v2246, 0.0
        %v2330 = vmax.f32 %v2249, 0.0
        %v2331 = vmax.f32 %v2251, 0.0
        %v2332 = vmax.f32 %v2254, 0.0
        %v2333 = vmax.f32 %v2256, 0.0
        %v2334 = vmax.f32 %v2259, 0.0
        %v2335 = vmax.f32 %v2261, 0.0
        %v2336 = vmax.f32 %v2264, 0.0
        %v2337 = vmax.f32 %v2266, 0.0
        %v2338 = vmax.f32 %v2269, 0.0
        %v2339 = vmax.f32 %v2271, 0.0
        %v2340 = vmax.f32 %v2274, 0.0
        %v2341 = vmax.f32 %v2276, 0.0
        %v2342 = vld [vmem:[%s8] sm:$0x1]
        %v2344 = vperm.slane %v2342, 0
        %v2346 = vmul.f32 %v2278, %v2344
        %v2347 = vmul.f32 %v2279, %v2344
        %v2348 = vmul.f32 %v2280, %v2344
        %v2349 = vmul.f32 %v2281, %v2344
        %v2350 = vmul.f32 %v2282, %v2344
        %v2351 = vmul.f32 %v2283, %v2344
        %v2352 = vmul.f32 %v2284, %v2344
        %v2353 = vmul.f32 %v2285, %v2344
        %v2354 = vmul.f32 %v2286, %v2344
        %v2355 = vmul.f32 %v2287, %v2344
        %v2356 = vmul.f32 %v2288, %v2344
        %v2357 = vmul.f32 %v2289, %v2344
        %v2358 = vmul.f32 %v2290, %v2344
        %v2359 = vmul.f32 %v2291, %v2344
        %v2360 = vmul.f32 %v2292, %v2344
        %v2361 = vmul.f32 %v2293, %v2344
        %v2362 = vmul.f32 %v2294, %v2344
        %v2363 = vmul.f32 %v2295, %v2344
        %v2364 = vmul.f32 %v2296, %v2344
        %v2365 = vmul.f32 %v2297, %v2344
        %v2366 = vmul.f32 %v2298, %v2344
        %v2367 = vmul.f32 %v2299, %v2344
        %v2368 = vmul.f32 %v2300, %v2344
        %v2369 = vmul.f32 %v2301, %v2344
        %v2370 = vmul.f32 %v2302, %v2344
        %v2371 = vmul.f32 %v2303, %v2344
        %v2372 = vmul.f32 %v2304, %v2344
        %v2373 = vmul.f32 %v2305, %v2344
        %v2374 = vmul.f32 %v2306, %v2344
        %v2375 = vmul.f32 %v2307, %v2344
        %v2376 = vmul.f32 %v2308, %v2344
        %v2377 = vmul.f32 %v2309, %v2344
        %v2378 = vmul.f32 %v2310, %v2344
        %v2379 = vmul.f32 %v2311, %v2344
        %v2380 = vmul.f32 %v2312, %v2344
        %v2381 = vmul.f32 %v2313, %v2344
        %v2382 = vmul.f32 %v2314, %v2344
        %v2383 = vmul.f32 %v2315, %v2344
        %v2384 = vmul.f32 %v2316, %v2344
        %v2385 = vmul.f32 %v2317, %v2344
        %v2386 = vmul.f32 %v2318, %v2344
        %v2387 = vmul.f32 %v2319, %v2344
        %v2388 = vmul.f32 %v2320, %v2344
        %v2389 = vmul.f32 %v2321, %v2344
        %v2390 = vmul.f32 %v2322, %v2344
        %v2391 = vmul.f32 %v2323, %v2344
        %v2392 = vmul.f32 %v2324, %v2344
        %v2393 = vmul.f32 %v2325, %v2344
        %v2394 = vmul.f32 %v2326, %v2344
        %v2395 = vmul.f32 %v2327, %v2344
        %v2396 = vmul.f32 %v2328, %v2344
        %v2397 = vmul.f32 %v2329, %v2344
        %v2398 = vmul.f32 %v2330, %v2344
        %v2399 = vmul.f32 %v2331, %v2344
        %v2400 = vmul.f32 %v2332, %v2344
        %v2401 = vmul.f32 %v2333, %v2344
        %v2402 = vmul.f32 %v2334, %v2344
        %v2403 = vmul.f32 %v2335, %v2344
        %v2404 = vmul.f32 %v2336, %v2344
        %v2405 = vmul.f32 %v2337, %v2344
        %v2406 = vmul.f32 %v2338, %v2344
        %v2407 = vmul.f32 %v2339, %v2344
        %v2408 = vmul.f32 %v2340, %v2344
        %v2409 = vmul.f32 %v2341, %v2344
        %v2410 = vld [vmem:[%s9] sm:$0x1]
        %v2412 = vperm.slane %v2410, 0
        %v2414 = vadd.f32 %v2346, %v2412
        %v2415 = vadd.f32 %v2347, %v2412
        %v2416 = vadd.f32 %v2348, %v2412
        %v2417 = vadd.f32 %v2349, %v2412
        %v2418 = vadd.f32 %v2350, %v2412
        %v2419 = vadd.f32 %v2351, %v2412
        %v2420 = vadd.f32 %v2352, %v2412
        %v2421 = vadd.f32 %v2353, %v2412
        %v2422 = vadd.f32 %v2354, %v2412
        %v2423 = vadd.f32 %v2355, %v2412
        %v2424 = vadd.f32 %v2356, %v2412
        %v2425 = vadd.f32 %v2357, %v2412
        %v2426 = vadd.f32 %v2358, %v2412
        %v2427 = vadd.f32 %v2359, %v2412
        %v2428 = vadd.f32 %v2360, %v2412
        %v2429 = vadd.f32 %v2361, %v2412
        %v2430 = vadd.f32 %v2362, %v2412
        %v2431 = vadd.f32 %v2363, %v2412
        %v2432 = vadd.f32 %v2364, %v2412
        %v2433 = vadd.f32 %v2365, %v2412
        %v2434 = vadd.f32 %v2366, %v2412
        %v2435 = vadd.f32 %v2367, %v2412
        %v2436 = vadd.f32 %v2368, %v2412
        %v2437 = vadd.f32 %v2369, %v2412
        %v2438 = vadd.f32 %v2370, %v2412
        %v2439 = vadd.f32 %v2371, %v2412
        %v2440 = vadd.f32 %v2372, %v2412
        %v2441 = vadd.f32 %v2373, %v2412
        %v2442 = vadd.f32 %v2374, %v2412
        %v2443 = vadd.f32 %v2375, %v2412
        %v2444 = vadd.f32 %v2376, %v2412
        %v2445 = vadd.f32 %v2377, %v2412
        %v2446 = vadd.f32 %v2378, %v2412
        %v2447 = vadd.f32 %v2379, %v2412
        %v2448 = vadd.f32 %v2380, %v2412
        %v2449 = vadd.f32 %v2381, %v2412
        %v2450 = vadd.f32 %v2382, %v2412
        %v2451 = vadd.f32 %v2383, %v2412
        %v2452 = vadd.f32 %v2384, %v2412
        %v2453 = vadd.f32 %v2385, %v2412
        %v2454 = vadd.f32 %v2386, %v2412
        %v2455 = vadd.f32 %v2387, %v2412
        %v2456 = vadd.f32 %v2388, %v2412
        %v2457 = vadd.f32 %v2389, %v2412
        %v2458 = vadd.f32 %v2390, %v2412
        %v2459 = vadd.f32 %v2391, %v2412
        %v2460 = vadd.f32 %v2392, %v2412
        %v2461 = vadd.f32 %v2393, %v2412
        %v2462 = vadd.f32 %v2394, %v2412
        %v2463 = vadd.f32 %v2395, %v2412
        %v2464 = vadd.f32 %v2396, %v2412
        %v2465 = vadd.f32 %v2397, %v2412
        %v2466 = vadd.f32 %v2398, %v2412
        %v2467 = vadd.f32 %v2399, %v2412
        %v2468 = vadd.f32 %v2400, %v2412
        %v2469 = vadd.f32 %v2401, %v2412
        %v2470 = vadd.f32 %v2402, %v2412
        %v2471 = vadd.f32 %v2403, %v2412
        %v2472 = vadd.f32 %v2404, %v2412
        %v2473 = vadd.f32 %v2405, %v2412
        %v2474 = vadd.f32 %v2406, %v2412
        %v2475 = vadd.f32 %v2407, %v2412
        %v2476 = vadd.f32 %v2408, %v2412
        %v2477 = vadd.f32 %v2409, %v2412
        %2479 = vset.pattern.permute.xlu0 0
        %2480 = vperm.xlu0 %2479, %v945
        %v2481 = vpop.permute.xlu0 %2480
        %2484 = vset.pattern.permute.xlu0 0
        %2485 = vperm.xlu0 %2484, %v946
        %v2486 = vpop.permute.xlu0 %2485
        %2489 = vset.pattern.permute.xlu0 0
        %2490 = vperm.xlu0 %2489, %v947
        %v2491 = vpop.permute.xlu0 %2490
        %2494 = vset.pattern.permute.xlu0 0
        %2495 = vperm.xlu0 %2494, %v948
        %v2496 = vpop.permute.xlu0 %2495
        %2499 = vset.pattern.permute.xlu0 0
        %2500 = vperm.xlu0 %2499, %v949
        %v2501 = vpop.permute.xlu0 %2500
        %2504 = vset.pattern.permute.xlu0 0
        %2505 = vperm.xlu0 %2504, %v950
        %v2506 = vpop.permute.xlu0 %2505
        %2509 = vset.pattern.permute.xlu0 0
        %2510 = vperm.xlu0 %2509, %v951
        %v2511 = vpop.permute.xlu0 %2510
        %2514 = vset.pattern.permute.xlu0 0
        %2515 = vperm.xlu0 %2514, %v952
        %v2516 = vpop.permute.xlu0 %2515
        %2519 = vset.pattern.permute.xlu0 0
        %2520 = vperm.xlu0 %2519, %v953
        %v2521 = vpop.permute.xlu0 %2520
        %2524 = vset.pattern.permute.xlu0 0
        %2525 = vperm.xlu0 %2524, %v954
        %v2526 = vpop.permute.xlu0 %2525
        %2529 = vset.pattern.permute.xlu0 0
        %2530 = vperm.xlu0 %2529, %v955
        %v2531 = vpop.permute.xlu0 %2530
        %2534 = vset.pattern.permute.xlu0 0
        %2535 = vperm.xlu0 %2534, %v956
        %v2536 = vpop.permute.xlu0 %2535
        %2539 = vset.pattern.permute.xlu0 0
        %2540 = vperm.xlu0 %2539, %v957
        %v2541 = vpop.permute.xlu0 %2540
        %2544 = vset.pattern.permute.xlu0 0
        %2545 = vperm.xlu0 %2544, %v958
        %v2546 = vpop.permute.xlu0 %2545
        %2549 = vset.pattern.permute.xlu0 0
        %2550 = vperm.xlu0 %2549, %v959
        %v2551 = vpop.permute.xlu0 %2550
        %2554 = vset.pattern.permute.xlu0 0
        %2555 = vperm.xlu0 %2554, %v960
        %v2556 = vpop.permute.xlu0 %2555
        %2559 = vset.pattern.permute.xlu0 0
        %2560 = vperm.xlu0 %2559, %v961
        %v2561 = vpop.permute.xlu0 %2560
        %2564 = vset.pattern.permute.xlu0 0
        %2565 = vperm.xlu0 %2564, %v962
        %v2566 = vpop.permute.xlu0 %2565
        %2569 = vset.pattern.permute.xlu0 0
        %2570 = vperm.xlu0 %2569, %v963
        %v2571 = vpop.permute.xlu0 %2570
        %2574 = vset.pattern.permute.xlu0 0
        %2575 = vperm.xlu0 %2574, %v964
        %v2576 = vpop.permute.xlu0 %2575
        %2579 = vset.pattern.permute.xlu0 0
        %2580 = vperm.xlu0 %2579, %v965
        %v2581 = vpop.permute.xlu0 %2580
        %2584 = vset.pattern.permute.xlu0 0
        %2585 = vperm.xlu0 %2584, %v966
        %v2586 = vpop.permute.xlu0 %2585
        %2589 = vset.pattern.permute.xlu0 0
        %2590 = vperm.xlu0 %2589, %v967
        %v2591 = vpop.permute.xlu0 %2590
        %2594 = vset.pattern.permute.xlu0 0
        %2595 = vperm.xlu0 %2594, %v968
        %v2596 = vpop.permute.xlu0 %2595
        %2599 = vset.pattern.permute.xlu0 0
        %2600 = vperm.xlu0 %2599, %v969
        %v2601 = vpop.permute.xlu0 %2600
        %2604 = vset.pattern.permute.xlu0 0
        %2605 = vperm.xlu0 %2604, %v970
        %v2606 = vpop.permute.xlu0 %2605
        %2609 = vset.pattern.permute.xlu0 0
        %2610 = vperm.xlu0 %2609, %v971
        %v2611 = vpop.permute.xlu0 %2610
        %2614 = vset.pattern.permute.xlu0 0
        %2615 = vperm.xlu0 %2614, %v972
        %v2616 = vpop.permute.xlu0 %2615
        %2619 = vset.pattern.permute.xlu0 0
        %2620 = vperm.xlu0 %2619, %v973
        %v2621 = vpop.permute.xlu0 %2620
        %2624 = vset.pattern.permute.xlu0 0
        %2625 = vperm.xlu0 %2624, %v974
        %v2626 = vpop.permute.xlu0 %2625
        %2629 = vset.pattern.permute.xlu0 0
        %2630 = vperm.xlu0 %2629, %v975
        %v2631 = vpop.permute.xlu0 %2630
        %2634 = vset.pattern.permute.xlu0 0
        %2635 = vperm.xlu0 %2634, %v976
        %v2636 = vpop.permute.xlu0 %2635
        %2639 = vset.pattern.permute.xlu0 0
        %2640 = vperm.xlu0 %2639, %v977
        %v2641 = vpop.permute.xlu0 %2640
        %2644 = vset.pattern.permute.xlu0 0
        %2645 = vperm.xlu0 %2644, %v978
        %v2646 = vpop.permute.xlu0 %2645
        %2649 = vset.pattern.permute.xlu0 0
        %2650 = vperm.xlu0 %2649, %v979
        %v2651 = vpop.permute.xlu0 %2650
        %2654 = vset.pattern.permute.xlu0 0
        %2655 = vperm.xlu0 %2654, %v980
        %v2656 = vpop.permute.xlu0 %2655
        %2659 = vset.pattern.permute.xlu0 0
        %2660 = vperm.xlu0 %2659, %v981
        %v2661 = vpop.permute.xlu0 %2660
        %2664 = vset.pattern.permute.xlu0 0
        %2665 = vperm.xlu0 %2664, %v982
        %v2666 = vpop.permute.xlu0 %2665
        %2669 = vset.pattern.permute.xlu0 0
        %2670 = vperm.xlu0 %2669, %v983
        %v2671 = vpop.permute.xlu0 %2670
        %2674 = vset.pattern.permute.xlu0 0
        %2675 = vperm.xlu0 %2674, %v984
        %v2676 = vpop.permute.xlu0 %2675
        %2679 = vset.pattern.permute.xlu0 0
        %2680 = vperm.xlu0 %2679, %v985
        %v2681 = vpop.permute.xlu0 %2680
        %2684 = vset.pattern.permute.xlu0 0
        %2685 = vperm.xlu0 %2684, %v986
        %v2686 = vpop.permute.xlu0 %2685
        %2689 = vset.pattern.permute.xlu0 0
        %2690 = vperm.xlu0 %2689, %v987
        %v2691 = vpop.permute.xlu0 %2690
        %2694 = vset.pattern.permute.xlu0 0
        %2695 = vperm.xlu0 %2694, %v988
        %v2696 = vpop.permute.xlu0 %2695
        %2699 = vset.pattern.permute.xlu0 0
        %2700 = vperm.xlu0 %2699, %v989
        %v2701 = vpop.permute.xlu0 %2700
        %2704 = vset.pattern.permute.xlu0 0
        %2705 = vperm.xlu0 %2704, %v990
        %v2706 = vpop.permute.xlu0 %2705
        %2709 = vset.pattern.permute.xlu0 0
        %2710 = vperm.xlu0 %2709, %v991
        %v2711 = vpop.permute.xlu0 %2710
        %2714 = vset.pattern.permute.xlu0 0
        %2715 = vperm.xlu0 %2714, %v992
        %v2716 = vpop.permute.xlu0 %2715
        %2719 = vset.pattern.permute.xlu0 0
        %2720 = vperm.xlu0 %2719, %v993
        %v2721 = vpop.permute.xlu0 %2720
        %2724 = vset.pattern.permute.xlu0 0
        %2725 = vperm.xlu0 %2724, %v994
        %v2726 = vpop.permute.xlu0 %2725
        %2729 = vset.pattern.permute.xlu0 0
        %2730 = vperm.xlu0 %2729, %v995
        %v2731 = vpop.permute.xlu0 %2730
        %2734 = vset.pattern.permute.xlu0 0
        %2735 = vperm.xlu0 %2734, %v996
        %v2736 = vpop.permute.xlu0 %2735
        %2739 = vset.pattern.permute.xlu0 0
        %2740 = vperm.xlu0 %2739, %v997
        %v2741 = vpop.permute.xlu0 %2740
        %2744 = vset.pattern.permute.xlu0 0
        %2745 = vperm.xlu0 %2744, %v998
        %v2746 = vpop.permute.xlu0 %2745
        %2749 = vset.pattern.permute.xlu0 0
        %2750 = vperm.xlu0 %2749, %v999
        %v2751 = vpop.permute.xlu0 %2750
        %2754 = vset.pattern.permute.xlu0 0
        %2755 = vperm.xlu0 %2754, %v1000
        %v2756 = vpop.permute.xlu0 %2755
        %2759 = vset.pattern.permute.xlu0 0
        %2760 = vperm.xlu0 %2759, %v1001
        %v2761 = vpop.permute.xlu0 %2760
        %2764 = vset.pattern.permute.xlu0 0
        %2765 = vperm.xlu0 %2764, %v1002
        %v2766 = vpop.permute.xlu0 %2765
        %2769 = vset.pattern.permute.xlu0 0
        %2770 = vperm.xlu0 %2769, %v1003
        %v2771 = vpop.permute.xlu0 %2770
        %2774 = vset.pattern.permute.xlu0 0
        %2775 = vperm.xlu0 %2774, %v1004
        %v2776 = vpop.permute.xlu0 %2775
        %2779 = vset.pattern.permute.xlu0 0
        %2780 = vperm.xlu0 %2779, %v1005
        %v2781 = vpop.permute.xlu0 %2780
        %2784 = vset.pattern.permute.xlu0 0
        %2785 = vperm.xlu0 %2784, %v1006
        %v2786 = vpop.permute.xlu0 %2785
        %2789 = vset.pattern.permute.xlu0 0
        %2790 = vperm.xlu0 %2789, %v1007
        %v2791 = vpop.permute.xlu0 %2790
        %2794 = vset.pattern.permute.xlu0 0
        %2795 = vperm.xlu0 %2794, %v1008
        %v2796 = vpop.permute.xlu0 %2795
        %v2798 = vadd.f32 %v2414, %v2481
        %v2799 = vadd.f32 %v2415, %v2486
        %v2800 = vadd.f32 %v2416, %v2491
        %v2801 = vadd.f32 %v2417, %v2496
        %v2802 = vadd.f32 %v2418, %v2501
        %v2803 = vadd.f32 %v2419, %v2506
        %v2804 = vadd.f32 %v2420, %v2511
        %v2805 = vadd.f32 %v2421, %v2516
        %v2806 = vadd.f32 %v2422, %v2521
        %v2807 = vadd.f32 %v2423, %v2526
        %v2808 = vadd.f32 %v2424, %v2531
        %v2809 = vadd.f32 %v2425, %v2536
        %v2810 = vadd.f32 %v2426, %v2541
        %v2811 = vadd.f32 %v2427, %v2546
        %v2812 = vadd.f32 %v2428, %v2551
        %v2813 = vadd.f32 %v2429, %v2556
        %v2814 = vadd.f32 %v2430, %v2561
        %v2815 = vadd.f32 %v2431, %v2566
        %v2816 = vadd.f32 %v2432, %v2571
        %v2817 = vadd.f32 %v2433, %v2576
        %v2818 = vadd.f32 %v2434, %v2581
        %v2819 = vadd.f32 %v2435, %v2586
        %v2820 = vadd.f32 %v2436, %v2591
        %v2821 = vadd.f32 %v2437, %v2596
        %v2822 = vadd.f32 %v2438, %v2601
        %v2823 = vadd.f32 %v2439, %v2606
        %v2824 = vadd.f32 %v2440, %v2611
        %v2825 = vadd.f32 %v2441, %v2616
        %v2826 = vadd.f32 %v2442, %v2621
        %v2827 = vadd.f32 %v2443, %v2626
        %v2828 = vadd.f32 %v2444, %v2631
        %v2829 = vadd.f32 %v2445, %v2636
        %v2830 = vadd.f32 %v2446, %v2641
        %v2831 = vadd.f32 %v2447, %v2646
        %v2832 = vadd.f32 %v2448, %v2651
        %v2833 = vadd.f32 %v2449, %v2656
        %v2834 = vadd.f32 %v2450, %v2661
        %v2835 = vadd.f32 %v2451, %v2666
        %v2836 = vadd.f32 %v2452, %v2671
        %v2837 = vadd.f32 %v2453, %v2676
        %v2838 = vadd.f32 %v2454, %v2681
        %v2839 = vadd.f32 %v2455, %v2686
        %v2840 = vadd.f32 %v2456, %v2691
        %v2841 = vadd.f32 %v2457, %v2696
        %v2842 = vadd.f32 %v2458, %v2701
        %v2843 = vadd.f32 %v2459, %v2706
        %v2844 = vadd.f32 %v2460, %v2711
        %v2845 = vadd.f32 %v2461, %v2716
        %v2846 = vadd.f32 %v2462, %v2721
        %v2847 = vadd.f32 %v2463, %v2726
        %v2848 = vadd.f32 %v2464, %v2731
        %v2849 = vadd.f32 %v2465, %v2736
        %v2850 = vadd.f32 %v2466, %v2741
        %v2851 = vadd.f32 %v2467, %v2746
        %v2852 = vadd.f32 %v2468, %v2751
        %v2853 = vadd.f32 %v2469, %v2756
        %v2854 = vadd.f32 %v2470, %v2761
        %v2855 = vadd.f32 %v2471, %v2766
        %v2856 = vadd.f32 %v2472, %v2771
        %v2857 = vadd.f32 %v2473, %v2776
        %v2858 = vadd.f32 %v2474, %v2781
        %v2859 = vadd.f32 %v2475, %v2786
        %v2860 = vadd.f32 %v2476, %v2791
        %v2861 = vadd.f32 %v2477, %v2796
        %v2862 = vmax.f32 %v2798, %v2799
        %v2863 = vmax.f32 %v2862, %v2800
        %v2864 = vmax.f32 %v2863, %v2801
        %v2865 = vrot.slane %v2864, 4
        %v2866 = vmax.f32 %v2864, %v2865
        %v2867 = vrot.slane %v2866, 2
        %v2868 = vmax.f32 %v2866, %v2867
        %v2869 = vrot.slane %v2868, 1
        %v2870 = vmax.f32 %v2868, %v2869
        %v2871 = vmax.f32 %v2802, %v2803
        %v2872 = vmax.f32 %v2871, %v2804
        %v2873 = vmax.f32 %v2872, %v2805
        %v2874 = vrot.slane %v2873, 4
        %v2875 = vmax.f32 %v2873, %v2874
        %v2876 = vrot.slane %v2875, 2
        %v2877 = vmax.f32 %v2875, %v2876
        %v2878 = vrot.slane %v2877, 1
        %v2879 = vmax.f32 %v2877, %v2878
        %v2880 = vmax.f32 %v2806, %v2807
        %v2881 = vmax.f32 %v2880, %v2808
        %v2882 = vmax.f32 %v2881, %v2809
        %v2883 = vrot.slane %v2882, 4
        %v2884 = vmax.f32 %v2882, %v2883
        %v2885 = vrot.slane %v2884, 2
        %v2886 = vmax.f32 %v2884, %v2885
        %v2887 = vrot.slane %v2886, 1
        %v2888 = vmax.f32 %v2886, %v2887
        %v2889 = vmax.f32 %v2810, %v2811
        %v2890 = vmax.f32 %v2889, %v2812
        %v2891 = vmax.f32 %v2890, %v2813
        %v2892 = vrot.slane %v2891, 4
        %v2893 = vmax.f32 %v2891, %v2892
        %v2894 = vrot.slane %v2893, 2
        %v2895 = vmax.f32 %v2893, %v2894
        %v2896 = vrot.slane %v2895, 1
        %v2897 = vmax.f32 %v2895, %v2896
        %v2898 = vmax.f32 %v2814, %v2815
        %v2899 = vmax.f32 %v2898, %v2816
        %v2900 = vmax.f32 %v2899, %v2817
        %v2901 = vrot.slane %v2900, 4
        %v2902 = vmax.f32 %v2900, %v2901
        %v2903 = vrot.slane %v2902, 2
        %v2904 = vmax.f32 %v2902, %v2903
        %v2905 = vrot.slane %v2904, 1
        %v2906 = vmax.f32 %v2904, %v2905
        %v2907 = vmax.f32 %v2818, %v2819
        %v2908 = vmax.f32 %v2907, %v2820
        %v2909 = vmax.f32 %v2908, %v2821
        %v2910 = vrot.slane %v2909, 4
        %v2911 = vmax.f32 %v2909, %v2910
        %v2912 = vrot.slane %v2911, 2
        %v2913 = vmax.f32 %v2911, %v2912
        %v2914 = vrot.slane %v2913, 1
        %v2915 = vmax.f32 %v2913, %v2914
        %v2916 = vmax.f32 %v2822, %v2823
        %v2917 = vmax.f32 %v2916, %v2824
        %v2918 = vmax.f32 %v2917, %v2825
        %v2919 = vrot.slane %v2918, 4
        %v2920 = vmax.f32 %v2918, %v2919
        %v2921 = vrot.slane %v2920, 2
        %v2922 = vmax.f32 %v2920, %v2921
        %v2923 = vrot.slane %v2922, 1
        %v2924 = vmax.f32 %v2922, %v2923
        %v2925 = vmax.f32 %v2826, %v2827
        %v2926 = vmax.f32 %v2925, %v2828
        %v2927 = vmax.f32 %v2926, %v2829
        %v2928 = vrot.slane %v2927, 4
        %v2929 = vmax.f32 %v2927, %v2928
        %v2930 = vrot.slane %v2929, 2
        %v2931 = vmax.f32 %v2929, %v2930
        %v2932 = vrot.slane %v2931, 1
        %v2933 = vmax.f32 %v2931, %v2932
        %v2934 = vmax.f32 %v2830, %v2831
        %v2935 = vmax.f32 %v2934, %v2832
        %v2936 = vmax.f32 %v2935, %v2833
        %v2937 = vrot.slane %v2936, 4
        %v2938 = vmax.f32 %v2936, %v2937
        %v2939 = vrot.slane %v2938, 2
        %v2940 = vmax.f32 %v2938, %v2939
        %v2941 = vrot.slane %v2940, 1
        %v2942 = vmax.f32 %v2940, %v2941
        %v2943 = vmax.f32 %v2834, %v2835
        %v2944 = vmax.f32 %v2943, %v2836
        %v2945 = vmax.f32 %v2944, %v2837
        %v2946 = vrot.slane %v2945, 4
        %v2947 = vmax.f32 %v2945, %v2946
        %v2948 = vrot.slane %v2947, 2
        %v2949 = vmax.f32 %v2947, %v2948
        %v2950 = vrot.slane %v2949, 1
        %v2951 = vmax.f32 %v2949, %v2950
        %v2952 = vmax.f32 %v2838, %v2839
        %v2953 = vmax.f32 %v2952, %v2840
        %v2954 = vmax.f32 %v2953, %v2841
        %v2955 = vrot.slane %v2954, 4
        %v2956 = vmax.f32 %v2954, %v2955
        %v2957 = vrot.slane %v2956, 2
        %v2958 = vmax.f32 %v2956, %v2957
        %v2959 = vrot.slane %v2958, 1
        %v2960 = vmax.f32 %v2958, %v2959
        %v2961 = vmax.f32 %v2842, %v2843
        %v2962 = vmax.f32 %v2961, %v2844
        %v2963 = vmax.f32 %v2962, %v2845
        %v2964 = vrot.slane %v2963, 4
        %v2965 = vmax.f32 %v2963, %v2964
        %v2966 = vrot.slane %v2965, 2
        %v2967 = vmax.f32 %v2965, %v2966
        %v2968 = vrot.slane %v2967, 1
        %v2969 = vmax.f32 %v2967, %v2968
        %v2970 = vmax.f32 %v2846, %v2847
        %v2971 = vmax.f32 %v2970, %v2848
        %v2972 = vmax.f32 %v2971, %v2849
        %v2973 = vrot.slane %v2972, 4
        %v2974 = vmax.f32 %v2972, %v2973
        %v2975 = vrot.slane %v2974, 2
        %v2976 = vmax.f32 %v2974, %v2975
        %v2977 = vrot.slane %v2976, 1
        %v2978 = vmax.f32 %v2976, %v2977
        %v2979 = vmax.f32 %v2850, %v2851
        %v2980 = vmax.f32 %v2979, %v2852
        %v2981 = vmax.f32 %v2980, %v2853
        %v2982 = vrot.slane %v2981, 4
        %v2983 = vmax.f32 %v2981, %v2982
        %v2984 = vrot.slane %v2983, 2
        %v2985 = vmax.f32 %v2983, %v2984
        %v2986 = vrot.slane %v2985, 1
        %v2987 = vmax.f32 %v2985, %v2986
        %v2988 = vmax.f32 %v2854, %v2855
        %v2989 = vmax.f32 %v2988, %v2856
        %v2990 = vmax.f32 %v2989, %v2857
        %v2991 = vrot.slane %v2990, 4
        %v2992 = vmax.f32 %v2990, %v2991
        %v2993 = vrot.slane %v2992, 2
        %v2994 = vmax.f32 %v2992, %v2993
        %v2995 = vrot.slane %v2994, 1
        %v2996 = vmax.f32 %v2994, %v2995
        %v2997 = vmax.f32 %v2858, %v2859
        %v2998 = vmax.f32 %v2997, %v2860
        %v2999 = vmax.f32 %v2998, %v2861
        %v3000 = vrot.slane %v2999, 4
        %v3001 = vmax.f32 %v2999, %v3000
        %v3002 = vrot.slane %v3001, 2
        %v3003 = vmax.f32 %v3001, %v3002
        %v3004 = vrot.slane %v3003, 1
        %v3005 = vmax.f32 %v3003, %v3004
        %vm3022 = vcmask 1041409
        %v3023 = vsel %vm3022, %v2879, %v2870
        %vm3024 = vcmask 1042434
        %v3025 = vsel %vm3024, %v2888, %v3023
        %vm3026 = vcmask 1043459
        %v3027 = vsel %vm3026, %v2897, %v3025
        %vm3028 = vcmask 1044484
        %v3029 = vsel %vm3028, %v2906, %v3027
        %vm3030 = vcmask 1045509
        %v3031 = vsel %vm3030, %v2915, %v3029
        %vm3032 = vcmask 1046534
        %v3033 = vsel %vm3032, %v2924, %v3031
        %vm3034 = vcmask 1047559
        %v3035 = vsel %vm3034, %v2933, %v3033
        %v3036 = vsel %vm3022, %v2951, %v2942
        %v3037 = vsel %vm3024, %v2960, %v3036
        %v3038 = vsel %vm3026, %v2969, %v3037
        %v3039 = vsel %vm3028, %v2978, %v3038
        %v3040 = vsel %vm3030, %v2987, %v3039
        %v3041 = vsel %vm3032, %v2996, %v3040
        %v3042 = vsel %vm3034, %v3005, %v3041
        %3045 = vst [vmem:[%s392] sm:$0xff] %v3035
        %3046 = vst [vmem:[%s392 + $0x8] sm:$0xff] %v3042
        %s3047 = sand.u32 %s268, 1
        %s3048 = scalar_lea.sflag [#allocation3], %s3047
        %s3049 = sand.u32 %s268, 1
        %s3050 = smul.addr %s3049, 16
        %s3051 = scalar_lea.vmem [#allocation2], %s3050
        // Predicated region
        $region61: #{tpu_custom_call.1} parent=59 // pred_check
          %p3052 = pneg %p278
        $region62: #{tpu_custom_call.1} parent=59 // pred_check_branch
          %3054 = sbr.rel (%p3052) target = $region64
        $region63: #{tpu_custom_call.1} parent=59 // pred_region
          %s3055 = smul.u32 2, %s29
          %3057 = vsyncadd %s3048, 0
          %s3058 = smul.addr %s28, 2
          %s3059 = sadd.s32 %s3055, %s3058
          %s3060 = smul.addr %s3059, 8
          %s3061 = scalar_lea.hbm %s10, %s3060
          %s3062 = sshll.u32 %s3051, 4
          %s3063 = int_to_ptr.vmem [resolvable:$true] %s3062
          %s3064 = sshll.u32 %s3061, 4
          %s3065 = int_to_ptr.hbm [resolvable:$true] %s3064
          %3070 = dma.vmem_to_hbm [thread:$0]  %s3063, 256, %s3065, %s3048, 128, 128, 8
        $region64: #{tpu_custom_call.1} parent=59 // pred_fallthru
          _
      $region60: #{tpu_custom_call.1} parent=5 // pred_fallthru
        _
      %p3071 = scmp.le.s32.totalorder 2, %s19
      // Predicated region
      $region65: #{tpu_custom_call.1} parent=5 // pred_check
        %p3072 = pneg %p3071
      $region66: #{tpu_custom_call.1} parent=5 // pred_check_branch
        %3074 = sbr.rel (%p3072) target = $region68
      $region67: #{tpu_custom_call.1} parent=5 // pred_region
        %s3075 = ssub.s32 %s19, 2
        // Predicated region
        $region69: #{tpu_custom_call.1} parent=67 // pred_check
          %p3076 = pneg %p284
        $region70: #{tpu_custom_call.1} parent=67 // pred_check_branch
          %3078 = sbr.rel (%p3076) target = $region72
        $region71: #{tpu_custom_call.1} parent=67 // pred_region
          %s3079 = sand.u32 %s269, 1
          %s3080 = scalar_lea.sflag [#allocation3], %s3079
          %s3081 = sand.u32 %s269, 1
          %s3082 = smul.addr %s3081, 16
          %s3083 = scalar_lea.vmem [#allocation2], %s3082
          %3085 = dma.done %s3080, 256
        $region72: #{tpu_custom_call.1} parent=67 // pred_fallthru
          _
      $region68: #{tpu_custom_call.1} parent=5 // pred_fallthru
        _
    $region6: #{tpu_custom_call.1} parent=1 // loop_footer
      %s23 = sadd.s32 1, %s19
    $region7: #{tpu_custom_call.1} parent=1 // loop_footer_branch
      %18 = sbr.rel target = $region3
    $region8: #{tpu_custom_call.1} parent=1 // loop_exit
      _
    %3086 = vsyncpa [#allocation3], 1
    %s3087 = scalar_lea.sflag [#allocation3], 1
    %3088 = vsyncpa %s3087, 1

</llo_original>
